<compile_context>
chip_gen: v6e
topology: v6e:2x2x1
jax: 0.10.0
libtpu: 0.0.40
codegen_flags: <defaults>
</compile_context>

<pallas_src>
import jax
import jax.numpy as jnp
from jax import lax
from jax.experimental import pallas as pl
from jax.experimental.pallas import tpu as pltpu

C_IN = 32
C_OUT = 32
K = 9
STRIDE = 50
PADDING = 45
OUT_PAD = 44


def _round_up(a, b):
    return (a + b - 1) // b * b


def convt_tanh_kernel(x_ref, w_ref, b_ref, o_ref):
    # x_ref: (tm, C_in)  w_ref: (C_in, C_out*K*K)  b_ref: (1, C_out*K*K)
    acc = jnp.dot(x_ref[...], w_ref[...], preferred_element_type=jnp.float32)
    o_ref[...] = jnp.tanh(acc + b_ref[...]).astype(o_ref.dtype)


def conv_transpose_tanh(x, weight, bias, *, tm_max=512):
    """x: (N, C_in, H_in, W_in) NCHW; weight: (C_in, C_out, K, K); bias: (C_out,)."""
    N, C_in, H_in, W_in = x.shape
    C_out = weight.shape[1]
    assert H_in >= 2 and W_in >= 2, "spatial size must be >= 2 for this config"

    # Only input pixels with ih>=1 and iw>=1 contribute to the (cropped) output.
    Hb, Wb = H_in - 1, W_in - 1
    x_act = x[:, :, 1:, 1:]                                  # (N, C_in, Hb, Wb)
    M = N * Hb * Wb
    Kout = C_out * K * K

    x_flat = jnp.transpose(x_act, (0, 2, 3, 1)).reshape(M, C_in)
    w_flat = weight.reshape(C_in, Kout)                      # per-ci order (co, kh, kw)
    b_rep = jnp.repeat(bias, K * K).reshape(1, Kout)         # bias per (co, kh, kw)

    # Adaptive row tile: as big as possible (<= tm_max) so per-step overhead is
    # amortized, but balanced across >= 2 grid steps (v7x has 2 TensorCores).
    # tm_max=512 keeps double-buffered (tm, 2592) f32 output tiles (~10.6 MB)
    # well inside the scoped-VMEM budget on v5e/v6e/v7x.
    M8 = _round_up(M, 8)
    grid_n = pl.cdiv(M8, tm_max)
    if M8 > 8:
        grid_n = max(grid_n, 2)
    tm = _round_up(pl.cdiv(M8, grid_n), 8)
    M_pad = tm * grid_n
    if M_pad != M:
        x_flat = jnp.pad(x_flat, ((0, M_pad - M), (0, 0)))

    patches = pl.pallas_call(
        convt_tanh_kernel,
        out_shape=jax.ShapeDtypeStruct((M_pad, Kout), jnp.float32),
        grid_spec=pltpu.PrefetchScalarGridSpec(
            num_scalar_prefetch=0,
            grid=(grid_n,),
            in_specs=[
                pl.BlockSpec((tm, C_in), lambda i: (i, 0)),
                pl.BlockSpec((C_in, Kout), lambda i: (0, 0)),
                pl.BlockSpec((1, Kout), lambda i: (0, 0)),
            ],
            out_specs=pl.BlockSpec((tm, Kout), lambda i: (i, 0)),
        ),
        compiler_params=pltpu.CompilerParams(
            dimension_semantics=("parallel",),
            vmem_limit_bytes=32 * 1024 * 1024),
    )(x_flat, w_flat, b_rep)

    # ---- epilogue: place disjoint taps + tanh(bias) background, crop to NCHW out.
    H_out = (H_in - 1) * STRIDE - 2 * PADDING + K + OUT_PAD   # = Hb*50 - 37
    W_out = (W_in - 1) * STRIDE - 2 * PADDING + K + OUT_PAD   # = Wb*50 - 37
    OFF = STRIDE - PADDING                                    # tap offset inside a 50-band (= 5)
    pad_hi = STRIDE - OFF - K

    patches = patches[:M].reshape(N, Hb, Wb, C_out, K, K)
    patches = jnp.transpose(patches, (0, 3, 1, 4, 2, 5))      # (N, C, Hb, K, Wb, K)

    # Zero-pad taps to full 50x50 bands, then select tap vs background.
    padded = jnp.pad(
        patches,
        ((0, 0), (0, 0), (0, 0), (OFF, pad_hi), (0, 0), (OFF, pad_hi)))
    pos = jnp.arange(STRIDE)
    in_tap = (pos >= OFF) & (pos < OFF + K)
    mask = in_tap[:, None] & in_tap[None, :]                  # (50, 50)
    bg = jnp.tanh(bias).astype(jnp.float32)

    full = jnp.where(mask[None, None, None, :, None, :],
                     padded,
                     bg[None, :, None, None, None, None])     # (N, C, Hb, 50, Wb, 50)
    full = full.reshape(N, C_out, Hb * STRIDE, Wb * STRIDE)
    # Crop drops the trailing 37 rows/cols (clips the kh=8/kw=8 tap of the last band).
    return full[:, :, :H_out, :W_out]


def reference(x, weight, bias):
    # ConvTranspose2d == dilated conv with flipped kernel and (possibly negative) padding.
    w_ref = jnp.flip(weight, (2, 3)).transpose(1, 0, 2, 3)    # (C_out, C_in, K, K)
    pad_lo = K - 1 - PADDING
    pad_hi = K - 1 - PADDING + OUT_PAD
    y = lax.conv_general_dilated(
        x, w_ref,
        window_strides=(1, 1),
        padding=[(pad_lo, pad_hi), (pad_lo, pad_hi)],
        lhs_dilation=(STRIDE, STRIDE),
        dimension_numbers=("NCHW", "OIHW", "NCHW"),
    ) + bias[None, :, None, None]
    return jnp.tanh(y)


if __name__ == "__main__":
    key = jax.random.PRNGKey(0)
    kx, kw, kb = jax.random.split(key, 3)

    # Small spatial size (the module fixes channels at 32).
    N, H_in, W_in = 2, 6, 6
    x = jax.random.normal(kx, (N, C_IN, H_in, W_in), dtype=jnp.float32)

    # Deterministic parameter init (PyTorch-style uniform bound 1/sqrt(fan_in)).
    bound = 1.0 / (C_IN * K * K) ** 0.5
    weight = jax.random.uniform(kw, (C_IN, C_OUT, K, K), jnp.float32, -bound, bound)
    bias = jax.random.uniform(kb, (C_OUT,), jnp.float32, -bound, bound)

    fn = jax.jit(conv_transpose_tanh)
    out = jax.block_until_ready(fn(x, weight, bias))

    ref = jax.block_until_ready(reference(x, weight, bias))
    assert out.shape == ref.shape, (out.shape, ref.shape)
    max_err = float(jnp.max(jnp.abs(out - ref)))
    assert jnp.allclose(out, ref, atol=1e-5, rtol=1e-5), max_err

    print("KERNEL_OK")
</pallas_src>

<mosaic_0001>
module attributes {stable_mosaic.version = 11 : i64} {
  func.func @convt_tanh_kernel(%arg0: i32, %arg1: memref<32x32xf32, #tpu.memory_space<vmem>>, %arg2: memref<32x2592xf32, #tpu.memory_space<vmem>>, %arg3: memref<1x2592xf32, #tpu.memory_space<vmem>>, %arg4: memref<32x2592xf32, #tpu.memory_space<vmem>>) attributes {dimension_semantics = [#tpu.dimension_semantics<parallel>], iteration_bounds = array<i64: 2>, scalar_prefetch = 0 : i64, scratch_operands = 0 : i64, tpu.core_type = #tpu.core_type<tc>, window_params = [{transform_indices = @transform_0, window_bounds = array<i64: 32, 32>}, {pipeline_mode = #tpu.pipeline_mode<synchronous>, transform_indices = @transform_1, window_bounds = array<i64: 32, 2592>}, {pipeline_mode = #tpu.pipeline_mode<synchronous>, transform_indices = @transform_2, window_bounds = array<i64: 1, 2592>}, {transform_indices = @transform_3, window_bounds = array<i64: 32, 2592>}]} {
    %c0 = arith.constant 0 : index
    %c0_0 = arith.constant 0 : index
    %0 = vector.load %arg1[%c0, %c0_0] : memref<32x32xf32, #tpu.memory_space<vmem>>, vector<32x32xf32>
    %c0_1 = arith.constant 0 : index
    %c0_2 = arith.constant 0 : index
    %1 = vector.load %arg2[%c0_1, %c0_2] : memref<32x2592xf32, #tpu.memory_space<vmem>>, vector<32x2592xf32>
    %cst = arith.constant dense<0.000000e+00> : vector<32x2592xf32>
    %2 = tpu.matmul %0, %1, %cst {dimension_numbers = #tpu.dot_dimension_numbers<[1], [0], [0], [1], [0, 0, 1, 1], [], []>} : vector<32x32xf32>, vector<32x2592xf32>, vector<32x2592xf32> -> vector<32x2592xf32>
    %c0_3 = arith.constant 0 : index
    %c0_4 = arith.constant 0 : index
    %3 = vector.load %arg3[%c0_3, %c0_4] : memref<1x2592xf32, #tpu.memory_space<vmem>>, vector<1x2592xf32>
    %4 = vector.broadcast %3 : vector<1x2592xf32> to vector<32x2592xf32>
    %5 = arith.addf %2, %4 : vector<32x2592xf32>
    %6 = math.tanh %5 : vector<32x2592xf32>
    %c0_5 = arith.constant 0 : index
    %c0_6 = arith.constant 0 : index
    %7 = vector.load %arg4[%c0_5, %c0_6] : memref<32x2592xf32, #tpu.memory_space<vmem>>, vector<32x2592xf32>
    tpu.vector_store %arg4[%c0_5, %c0_6], %6 {strides = array<i32>} : memref<32x2592xf32, #tpu.memory_space<vmem>>, vector<32x2592xf32>,
    return
  }
  func.func @transform_0(%arg0: i32) -> (i32, i32) {
    %c0_i32 = arith.constant 0 : i32
    %c0_i32_0 = arith.constant 0 : i32
    return %arg0, %c0_i32 : i32, i32
  }
  func.func @transform_1(%arg0: i32) -> (i32, i32) {
    %c0_i32 = arith.constant 0 : i32
    %c0_i32_0 = arith.constant 0 : i32
    %c0_i32_1 = arith.constant 0 : i32
    return %c0_i32, %c0_i32_0 : i32, i32
  }
  func.func @transform_2(%arg0: i32) -> (i32, i32) {
    %c0_i32 = arith.constant 0 : i32
    %c0_i32_0 = arith.constant 0 : i32
    %c0_i32_1 = arith.constant 0 : i32
    return %c0_i32, %c0_i32_0 : i32, i32
  }
  func.func @transform_3(%arg0: i32) -> (i32, i32) {
    %c0_i32 = arith.constant 0 : i32
    %c0_i32_0 = arith.constant 0 : i32
    return %arg0, %c0_i32 : i32, i32
  }
}

</mosaic_0001>

<llo_original>
// kernel: conv_transpose_tanh.1
$region0: #{conv_transpose_tanh.1}
  #allocation0 [shape = 'u32[]', space=smem, size = 0x4, offset = 0x4, fixed_abs, tag = 'smem constant byte address 0x4 - core index']
  #allocation1 [shape = 'u32[144,128]{1,0:T(1,128)}', space=vmem, size = 0x12000, scoped, tag = 'internal scratch']
  %s0 = inlined_call_operand.vmem [shape: f32[64,32], index: 0, kind: input, shape index: {}]
  %s1 = inlined_call_operand.vmem [shape: f32[32,2592], index: 1, kind: input, shape index: {}]
  %s2 = inlined_call_operand.vmem [shape: f32[1,2592], index: 2, kind: input, shape index: {}]
  %s3 = inlined_call_operand.vmem [shape: f32[64,2592], index: 3, kind: output, shape index: {}]
  %s4 = sld [smem:[#allocation0]]
  $region45: #{conv_transpose_tanh.1} parent=0
    _
  %s6 = ssub.s32 1, %s4
  %s7 = scalar_select 0, %s6, %s4
  loop: start=0, step=1, limit=4
  $region2: #{conv_transpose_tanh.1} parent=0 // loop_pre_header
    _
  $region3: #{conv_transpose_tanh.1} parent=0 // loop_header
    %s9 = sphi 0, %s13
    %p10 = scmp.ge.s32.totalorder %s9, 4
    %s19 = sphi 0, %s21
    %s22 = sphi 0, %s19
    %s23 = sphi 0, %s22
    %s39 = sphi 0, %s23
    %s43 = sphi 0, %s43
    %s45 = sphi 0, %s43
    %s46 = sphi 0, %s45
    %s60 = sphi 0, %s46
    %s64 = sphi 0, %s64
    %s66 = sphi 0, %s64
    %s67 = sphi 0, %s66
    %s81 = sphi 0, %s67
    %s87 = sphi 0, %s89
    %s90 = sphi 0, %s87
    %s91 = sphi 0, %s90
    %s107 = sphi 0, %s91
  $region4: #{conv_transpose_tanh.1} parent=0 // loop_header_branch
    %12 = sbr.rel (%p10) target = $region8
  $region5: #{conv_transpose_tanh.1} parent=0 // loop_body
    %s14 = ssub.s32 %s9, 1
    %s15 = ssub.s32 %s9, 2
    %s16 = sadd.s32 %s9, 1
    %s17 = ssub.s32 %s9, %s16
    %p18 = scmp.eq.s32.totalorder %s17, 0
    %s20 = sadd.s32 %s19, 1
    %s21 = scalar_select %p18, %s19, %s20
    %p24 = pneg %p18
    %p25 = scmp.eq.s32.totalorder %s9, 1
    %p26 = por %p24, %p25
    %p27 = scmp.ne.s32.totalorder %s19, %s22
    %p28 = scmp.eq.s32.totalorder %s9, 0
    %p29 = por %p27, %p28
    %p30 = scmp.ne.s32.totalorder %s19, %s22
    %p31 = scmp.eq.s32.totalorder %s14, 1
    %p32 = por %p30, %p31
    %p33 = scmp.ne.s32.totalorder %s22, %s23
    %p34 = scmp.eq.s32.totalorder %s14, 0
    %p35 = por %p33, %p34
    %p36 = scmp.ne.s32.totalorder %s22, %s23
    %p37 = scmp.eq.s32.totalorder %s15, 1
    %p38 = por %p36, %p37
    %p40 = scmp.ne.s32.totalorder %s23, %s39
    %p41 = scmp.eq.s32.totalorder %s15, 0
    %p42 = por %p40, %p41
    %s44 = sadd.s32 %s43, 1
    %p47 = scmp.eq.s32.totalorder %s9, 1
    %p48 = scmp.ne.s32.totalorder %s43, %s45
    %p49 = scmp.eq.s32.totalorder %s9, 0
    %p50 = por %p48, %p49
    %p51 = scmp.ne.s32.totalorder %s43, %s45
    %p52 = scmp.eq.s32.totalorder %s14, 1
    %p53 = por %p51, %p52
    %p54 = scmp.ne.s32.totalorder %s45, %s46
    %p55 = scmp.eq.s32.totalorder %s14, 0
    %p56 = por %p54, %p55
    %p57 = scmp.ne.s32.totalorder %s45, %s46
    %p58 = scmp.eq.s32.totalorder %s15, 1
    %p59 = por %p57, %p58
    %p61 = scmp.ne.s32.totalorder %s46, %s60
    %p62 = scmp.eq.s32.totalorder %s15, 0
    %p63 = por %p61, %p62
    %s65 = sadd.s32 %s64, 1
    %p68 = scmp.eq.s32.totalorder %s9, 1
    %p69 = scmp.ne.s32.totalorder %s64, %s66
    %p70 = scmp.eq.s32.totalorder %s9, 0
    %p71 = por %p69, %p70
    %p72 = scmp.ne.s32.totalorder %s64, %s66
    %p73 = scmp.eq.s32.totalorder %s14, 1
    %p74 = por %p72, %p73
    %p75 = scmp.ne.s32.totalorder %s66, %s67
    %p76 = scmp.eq.s32.totalorder %s14, 0
    %p77 = por %p75, %p76
    %p78 = scmp.ne.s32.totalorder %s66, %s67
    %p79 = scmp.eq.s32.totalorder %s15, 1
    %p80 = por %p78, %p79
    %p82 = scmp.ne.s32.totalorder %s67, %s81
    %p83 = scmp.eq.s32.totalorder %s15, 0
    %p84 = por %p82, %p83
    %s85 = ssub.s32 %s9, %s16
    %p86 = scmp.eq.s32.totalorder %s85, 0
    %s88 = sadd.s32 %s87, 1
    %s89 = scalar_select %p86, %s87, %s88
    %p92 = pneg %p86
    %p93 = scmp.eq.s32.totalorder %s9, 1
    %p94 = por %p92, %p93
    %p95 = scmp.ne.s32.totalorder %s87, %s90
    %p96 = scmp.eq.s32.totalorder %s9, 0
    %p97 = por %p95, %p96
    %p98 = scmp.ne.s32.totalorder %s87, %s90
    %p99 = scmp.eq.s32.totalorder %s14, 1
    %p100 = por %p98, %p99
    %p101 = scmp.ne.s32.totalorder %s90, %s91
    %p102 = scmp.eq.s32.totalorder %s14, 0
    %p103 = por %p101, %p102
    %p104 = scmp.ne.s32.totalorder %s90, %s91
    %p105 = scmp.eq.s32.totalorder %s15, 1
    %p106 = por %p104, %p105
    %p108 = scmp.ne.s32.totalorder %s91, %s107
    %p109 = scmp.eq.s32.totalorder %s15, 0
    %p110 = por %p108, %p109
    %p111 = scmp.le.s32.totalorder 1, %s9
    %p112 = scmp.lt.s32.totalorder %s9, 3
    %p113 = pnand %p111, %p112
    %p114 = pneg %p113
    // Predicated region
    $region9: #{conv_transpose_tanh.1} parent=5 // pred_check
      _
    $region10: #{conv_transpose_tanh.1} parent=5 // pred_check_branch
      %116 = sbr.rel (%p113) target = $region12
    $region11: #{conv_transpose_tanh.1} parent=5 // pred_region
      %s117 = ssub.s32 %s9, 1
      // Predicated region
      $region13: #{conv_transpose_tanh.1} parent=11 // pred_check
        %p118 = pneg %p56
      $region14: #{conv_transpose_tanh.1} parent=11 // pred_check_branch
        %120 = sbr.rel (%p118) target = $region16
      $region15: #{conv_transpose_tanh.1} parent=11 // pred_region
        _
      $region16: #{conv_transpose_tanh.1} parent=11 // pred_fallthru
        _
      // Predicated region
      $region17: #{conv_transpose_tanh.1} parent=11 // pred_check
        %p121 = pneg %p77
      $region18: #{conv_transpose_tanh.1} parent=11 // pred_check_branch
        %123 = sbr.rel (%p121) target = $region20
      $region19: #{conv_transpose_tanh.1} parent=11 // pred_region
        _
      $region20: #{conv_transpose_tanh.1} parent=11 // pred_fallthru
        _
    $region12: #{conv_transpose_tanh.1} parent=5 // pred_fallthru
      _
    %p124 = scmp.lt.s32.totalorder %s9, 2
    // Predicated region
    $region21: #{conv_transpose_tanh.1} parent=5 // pred_check
      %p125 = pneg %p124
    $region22: #{conv_transpose_tanh.1} parent=5 // pred_check_branch
      %127 = sbr.rel (%p125) target = $region24
    $region23: #{conv_transpose_tanh.1} parent=5 // pred_region
      // Predicated region
      $region25: #{conv_transpose_tanh.1} parent=23 // pred_check
        %p128 = pneg %p29
      $region26: #{conv_transpose_tanh.1} parent=23 // pred_check_branch
        %130 = sbr.rel (%p128) target = $region28
      $region27: #{conv_transpose_tanh.1} parent=23 // pred_region
        %s131 = smul.u32 4, %s9
        %p132 = scmp.lt.s32.totalorder %s131, 7
        %s133 = scalar_select %p132, %s131, 7
        %s134 = smul.addr %s133, 8
        %s135 = scalar_lea.vmem %s0, %s134
        %s136 = smul.u32 4, %s9
      $region28: #{conv_transpose_tanh.1} parent=23 // pred_fallthru
        _
    $region24: #{conv_transpose_tanh.1} parent=5 // pred_fallthru
      _
    %p137 = scmp.le.s32.totalorder 1, %s9
    %p138 = scmp.lt.s32.totalorder %s9, 3
    %p139 = pnand %p137, %p138
    %p140 = pneg %p139
    // Predicated region
    $region29: #{conv_transpose_tanh.1} parent=5 // pred_check
      _
    $region30: #{conv_transpose_tanh.1} parent=5 // pred_check_branch
      %142 = sbr.rel (%p139) target = $region32
    $region31: #{conv_transpose_tanh.1} parent=5 // pred_region
      %s143 = ssub.s32 %s9, 1
      %s144 = smul.u32 4, %s14
      %p145 = scmp.lt.s32.totalorder %s144, 7
      %s146 = scalar_select %p145, %s144, 7
      %s147 = smul.addr %s146, 8
      %s148 = scalar_lea.vmem %s0, %s147
      %p149 = pneg %p35
      %p150 = pneg %p32
      %p151 = pneg %p56
      %p152 = pneg %p53
      %p153 = pneg %p77
      %p154 = pneg %p74
      %p155 = pneg %p103
      %p156 = pneg %p100
      %s157 = smul.u32 4, %s14
      %p158 = scmp.lt.s32.totalorder %s157, 7
      %s159 = scalar_select %p158, %s157, 7
      %s160 = smul.addr %s159, 21
      %s161 = smul.addr %s160, 8
      %s162 = scalar_lea.vmem %s3, %s161
      %s163 = smul.u32 4, %s14
      %p164 = scmp.lt.s32.totalorder %s163, 7
      %s165 = scalar_select %p164, %s163, 7
      %s166 = smul.addr %s165, 8
      %s167 = scalar_lea.vmem %s0, %s166
      %s168 = smul.u32 4, %s14
      %s169 = smul.u32 4, %s14
      %p170 = scmp.lt.s32.totalorder %s169, 7
      %s171 = scalar_select %p170, %s169, 7
      %s172 = smul.addr %s171, 21
      %s173 = smul.addr %s172, 8
      %s174 = scalar_lea.vmem %s3, %s173
      %s175 = smul.u32 4, %s14
      %v176 = vld [vmem:[%s167] sm:$0xff]
      %v177 = vld [vmem:[%s167 + $0x8] sm:$0xff]
      %v178 = vld [vmem:[%s167 + $0x10] sm:$0xff]
      %v179 = vld [vmem:[%s167 + $0x18] sm:$0xff]
      %v180 = vld [vmem:[%s1] sm:$0xff]
      %v181 = vld [vmem:[%s1 + $0x8] sm:$0xff]
      %v182 = vld [vmem:[%s1 + $0x10] sm:$0xff]
      %v183 = vld [vmem:[%s1 + $0x18] sm:$0xff]
      %v184 = vld [vmem:[%s1 + $0x20] sm:$0xff]
      %v185 = vld [vmem:[%s1 + $0x28] sm:$0xff]
      %v186 = vld [vmem:[%s1 + $0x30] sm:$0xff]
      %v187 = vld [vmem:[%s1 + $0x38] sm:$0xff]
      %v188 = vld [vmem:[%s1 + $0x40] sm:$0xff]
      %v189 = vld [vmem:[%s1 + $0x48] sm:$0xff]
      %v190 = vld [vmem:[%s1 + $0x50] sm:$0xff]
      %v191 = vld [vmem:[%s1 + $0x58] sm:$0xff]
      %v192 = vld [vmem:[%s1 + $0x60] sm:$0xff]
      %v193 = vld [vmem:[%s1 + $0x68] sm:$0xff]
      %v194 = vld [vmem:[%s1 + $0x70] sm:$0xff]
      %v195 = vld [vmem:[%s1 + $0x78] sm:$0xff]
      %v196 = vld [vmem:[%s1 + $0x80] sm:$0xff]
      %v197 = vld [vmem:[%s1 + $0x88] sm:$0xff]
      %v198 = vld [vmem:[%s1 + $0x90] sm:$0xff]
      %v199 = vld [vmem:[%s1 + $0x98] sm:$0xff]
      %v200 = vld [vmem:[%s1 + $0xa0] sm:$0xff]
      %v201 = vld [vmem:[%s1 + $0xa8] sm:$0xff]
      %v202 = vld [vmem:[%s1 + $0xb0] sm:$0xff]
      %v203 = vld [vmem:[%s1 + $0xb8] sm:$0xff]
      %v204 = vld [vmem:[%s1 + $0xc0] sm:$0xff]
      %v205 = vld [vmem:[%s1 + $0xc8] sm:$0xff]
      %v206 = vld [vmem:[%s1 + $0xd0] sm:$0xff]
      %v207 = vld [vmem:[%s1 + $0xd8] sm:$0xff]
      %v208 = vld [vmem:[%s1 + $0xe0] sm:$0xff]
      %v209 = vld [vmem:[%s1 + $0xe8] sm:$0xff]
      %v210 = vld [vmem:[%s1 + $0xf0] sm:$0xff]
      %v211 = vld [vmem:[%s1 + $0xf8] sm:$0xff]
      %v212 = vld [vmem:[%s1 + $0x100] sm:$0xff]
      %v213 = vld [vmem:[%s1 + $0x108] sm:$0xff]
      %v214 = vld [vmem:[%s1 + $0x110] sm:$0xff]
      %v215 = vld [vmem:[%s1 + $0x118] sm:$0xff]
      %v216 = vld [vmem:[%s1 + $0x120] sm:$0xff]
      %v217 = vld [vmem:[%s1 + $0x128] sm:$0xff]
      %v218 = vld [vmem:[%s1 + $0x130] sm:$0xff]
      %v219 = vld [vmem:[%s1 + $0x138] sm:$0xff]
      %v220 = vld [vmem:[%s1 + $0x140] sm:$0xff]
      %v221 = vld [vmem:[%s1 + $0x148] sm:$0xff]
      %v222 = vld [vmem:[%s1 + $0x150] sm:$0xff]
      %v223 = vld [vmem:[%s1 + $0x158] sm:$0xff]
      %v224 = vld [vmem:[%s1 + $0x160] sm:$0xff]
      %v225 = vld [vmem:[%s1 + $0x168] sm:$0xff]
      %v226 = vld [vmem:[%s1 + $0x170] sm:$0xff]
      %v227 = vld [vmem:[%s1 + $0x178] sm:$0xff]
      %v228 = vld [vmem:[%s1 + $0x180] sm:$0xff]
      %v229 = vld [vmem:[%s1 + $0x188] sm:$0xff]
      %v230 = vld [vmem:[%s1 + $0x190] sm:$0xff]
      %v231 = vld [vmem:[%s1 + $0x198] sm:$0xff]
      %v232 = vld [vmem:[%s1 + $0x1a0] sm:$0xff]
      %v233 = vld [vmem:[%s1 + $0x1a8] sm:$0xff]
      %v234 = vld [vmem:[%s1 + $0x1b0] sm:$0xff]
      %v235 = vld [vmem:[%s1 + $0x1b8] sm:$0xff]
      %v236 = vld [vmem:[%s1 + $0x1c0] sm:$0xff]
      %v237 = vld [vmem:[%s1 + $0x1c8] sm:$0xff]
      %v238 = vld [vmem:[%s1 + $0x1d0] sm:$0xff]
      %v239 = vld [vmem:[%s1 + $0x1d8] sm:$0xff]
      %v240 = vld [vmem:[%s1 + $0x1e0] sm:$0xff]
      %v241 = vld [vmem:[%s1 + $0x1e8] sm:$0xff]
      %v242 = vld [vmem:[%s1 + $0x1f0] sm:$0xff]
      %v243 = vld [vmem:[%s1 + $0x1f8] sm:$0xff]
      %v244 = vld [vmem:[%s1 + $0x200] sm:$0xff]
      %v245 = vld [vmem:[%s1 + $0x208] sm:$0xff]
      %v246 = vld [vmem:[%s1 + $0x210] sm:$0xff]
      %v247 = vld [vmem:[%s1 + $0x218] sm:$0xff]
      %v248 = vld [vmem:[%s1 + $0x220] sm:$0xff]
      %v249 = vld [vmem:[%s1 + $0x228] sm:$0xff]
      %v250 = vld [vmem:[%s1 + $0x230] sm:$0xff]
      %v251 = vld [vmem:[%s1 + $0x238] sm:$0xff]
      %v252 = vld [vmem:[%s1 + $0x240] sm:$0xff]
      %v253 = vld [vmem:[%s1 + $0x248] sm:$0xff]
      %v254 = vld [vmem:[%s1 + $0x250] sm:$0xff]
      %v255 = vld [vmem:[%s1 + $0x258] sm:$0xff]
      %v256 = vld [vmem:[%s1 + $0x260] sm:$0xff]
      %v257 = vld [vmem:[%s1 + $0x268] sm:$0xff]
      %v258 = vld [vmem:[%s1 + $0x270] sm:$0xff]
      %v259 = vld [vmem:[%s1 + $0x278] sm:$0xff]
      %v260 = vld [vmem:[%s1 + $0x280] sm:$0xff]
      %v261 = vld [vmem:[%s1 + $0x288] sm:$0xff]
      %v262 = vld [vmem:[%s1 + $0x290] sm:$0xff]
      %v263 = vld [vmem:[%s1 + $0x298] sm:$0xff]
      %v264 = vld [vmem:[%s2] sm:$0xff]
      %v265 = vld [vmem:[%s2 + $0x8] sm:$0xff]
      %v266 = vld [vmem:[%s2 + $0x10] sm:$0x1f]
      %v270 = vlaneseq
      %v271 = vshrl.u32 %v270, 7
      %v272 = vsub.s32 0, %v271
      %v273 = vrot.slane %v264, %v272
      %v274 = vlaneseq
      %v275 = vshrl.u32 %v274, 7
      %v276 = vsub.s32 1, %v275
      %v277 = vrot.slane %v264, %v276
      %v278 = vlaneseq
      %v279 = vshrl.u32 %v278, 7
      %v280 = vsub.s32 2, %v279
      %v281 = vrot.slane %v264, %v280
      %v282 = vlaneseq
      %v283 = vshrl.u32 %v282, 7
      %v284 = vsub.s32 3, %v283
      %v285 = vrot.slane %v264, %v284
      %v286 = vlaneseq
      %v287 = vshrl.u32 %v286, 7
      %v288 = vsub.s32 4, %v287
      %v289 = vrot.slane %v264, %v288
      %v290 = vlaneseq
      %v291 = vshrl.u32 %v290, 7
      %v292 = vsub.s32 5, %v291
      %v293 = vrot.slane %v264, %v292
      %v294 = vlaneseq
      %v295 = vshrl.u32 %v294, 7
      %v296 = vsub.s32 6, %v295
      %v297 = vrot.slane %v264, %v296
      %v298 = vlaneseq
      %v299 = vshrl.u32 %v298, 7
      %v300 = vsub.s32 7, %v299
      %v301 = vrot.slane %v264, %v300
      %v302 = vlaneseq
      %v303 = vshrl.u32 %v302, 7
      %v304 = vsub.s32 0, %v303
      %v305 = vrot.slane %v265, %v304
      %v306 = vlaneseq
      %v307 = vshrl.u32 %v306, 7
      %v308 = vsub.s32 1, %v307
      %v309 = vrot.slane %v265, %v308
      %v310 = vlaneseq
      %v311 = vshrl.u32 %v310, 7
      %v312 = vsub.s32 2, %v311
      %v313 = vrot.slane %v265, %v312
      %v314 = vlaneseq
      %v315 = vshrl.u32 %v314, 7
      %v316 = vsub.s32 3, %v315
      %v317 = vrot.slane %v265, %v316
      %v318 = vlaneseq
      %v319 = vshrl.u32 %v318, 7
      %v320 = vsub.s32 4, %v319
      %v321 = vrot.slane %v265, %v320
      %v322 = vlaneseq
      %v323 = vshrl.u32 %v322, 7
      %v324 = vsub.s32 5, %v323
      %v325 = vrot.slane %v265, %v324
      %v326 = vlaneseq
      %v327 = vshrl.u32 %v326, 7
      %v328 = vsub.s32 6, %v327
      %v329 = vrot.slane %v265, %v328
      %v330 = vlaneseq
      %v331 = vshrl.u32 %v330, 7
      %v332 = vsub.s32 7, %v331
      %v333 = vrot.slane %v265, %v332
      %v334 = vlaneseq
      %v335 = vshrl.u32 %v334, 7
      %v336 = vsub.s32 0, %v335
      %v337 = vrot.slane %v266, %v336
      %v338 = vlaneseq
      %v339 = vshrl.u32 %v338, 7
      %v340 = vsub.s32 1, %v339
      %v341 = vrot.slane %v266, %v340
      %v342 = vlaneseq
      %v343 = vshrl.u32 %v342, 7
      %v344 = vsub.s32 2, %v343
      %v345 = vrot.slane %v266, %v344
      %v346 = vlaneseq
      %v347 = vshrl.u32 %v346, 7
      %v348 = vsub.s32 3, %v347
      %v349 = vrot.slane %v266, %v348
      %v350 = vlaneseq
      %v351 = vshrl.u32 %v350, 7
      %v352 = vsub.s32 4, %v351
      %v353 = vrot.slane %v266, %v352
      %vm375 = vcmask 261120
      %v377 = vsel %vm375, %v176, 0
      %v380 = vsel %vm375, %v177, 0
      %v383 = vsel %vm375, %v178, 0
      %v386 = vsel %vm375, %v179, 0
      %388 = vmatprep.subr.mxu0 0.0
      %389 = vmatpush1.msra.mxu0 0.0
      %390 = vmatprep.subr.mxu0 0.0
      %391 = vmatpush1.msra.mxu0 0.0
      %392 = vmatprep.subr.mxu0 0.0
      %393 = vmatpush1.msra.mxu0 0.0
      %394 = vmatprep.subr.mxu0 0.0
      %395 = vmatpush1.msra.mxu0 0.0
      %396 = vmatprep.subr.mxu0 0.0
      %397 = vmatpush1.msra.mxu0 0.0
      %398 = vmatprep.subr.mxu0 0.0
      %399 = vmatpush1.msra.mxu0 0.0
      %400 = vmatprep.subr.mxu0 0.0
      %401 = vmatpush1.msra.mxu0 0.0
      %402 = vmatprep.subr.mxu0 0.0
      %403 = vmatpush1.msra.mxu0 0.0
      %404 = vmatprep.subr.mxu0 0.0
      %405 = vmatpush1.msra.mxu0 0.0
      %406 = vmatprep.subr.mxu0 0.0
      %407 = vmatpush1.msra.mxu0 0.0
      %408 = vmatprep.subr.mxu0 0.0
      %409 = vmatpush1.msra.mxu0 0.0
      %410 = vmatprep.subr.mxu0 0.0
      %411 = vmatpush1.msra.mxu0 0.0
      %412 = vmatprep.subr.mxu0 %v244
      %413 = vmatpush1.msra.mxu0 %v243
      %414 = vmatprep.subr.mxu0 %v223
      %415 = vmatpush1.msra.mxu0 %v222
      %416 = vmatprep.subr.mxu0 %v202
      %417 = vmatpush1.msra.mxu0 %v201
      %418 = vmatprep.subr.mxu0 %v181
      %419 = vmatpush1.msra.mxu0 %v180
      %420 = vmatprep.subr.mxu0 0.0
      %421 = vmatpush2.msra.mxu0 0.0
      %422 = vmatprep.subr.mxu0 0.0
      %423 = vmatpush2.msra.mxu0 0.0
      %424 = vmatprep.subr.mxu0 0.0
      %425 = vmatpush2.msra.mxu0 0.0
      %426 = vmatprep.subr.mxu0 0.0
      %427 = vmatpush2.msra.mxu0 0.0
      %428 = vmatprep.subr.mxu0 0.0
      %429 = vmatpush2.msra.mxu0 0.0
      %430 = vmatprep.subr.mxu0 0.0
      %431 = vmatpush2.msra.mxu0 0.0
      %432 = vmatprep.subr.mxu0 0.0
      %433 = vmatpush2.msra.mxu0 0.0
      %434 = vmatprep.subr.mxu0 0.0
      %435 = vmatpush2.msra.mxu0 0.0
      %436 = vmatprep.subr.mxu0 0.0
      %437 = vmatpush2.msra.mxu0 0.0
      %438 = vmatprep.subr.mxu0 0.0
      %439 = vmatpush2.msra.mxu0 0.0
      %440 = vmatprep.subr.mxu0 0.0
      %441 = vmatpush2.msra.mxu0 0.0
      %442 = vmatprep.subr.mxu0 0.0
      %443 = vmatpush2.msra.mxu0 0.0
      %444 = vmatprep.subr.mxu0 0.0
      %445 = vmatpush2.msra.mxu0 0.0
      %446 = vmatprep.subr.mxu0 0.0
      %447 = vmatpush2.msra.mxu0 0.0
      %448 = vmatprep.subr.mxu0 0.0
      %449 = vmatpush2.msra.mxu0 0.0
      %450 = vmatprep.subr.mxu0 0.0
      %451 = vmatpush2.msra.mxu0 0.0
      %452 = vmatprep.mubr.f32.mxu0 0.0
      %453 = vmatmul.mubr.f32.gmra.mxu0 %v377
      %v454 = vpop.f32.mrf.mxu0
      %v455 = vadd.f32 %v273, %v454
      %v456 = vpop.f32.mrf.mxu0
      %v457 = vadd.f32 %v277, %v456
      %458 = vmatprep.mubr.f32.mxu0 0.0
      %459 = vmatmul.mubr.f32.gmra.mxu0 %v380
      %v460 = vpop.f32.mrf.mxu0
      %v461 = vadd.f32 %v273, %v460
      %v462 = vpop.f32.mrf.mxu0
      %v463 = vadd.f32 %v277, %v462
      %464 = vmatprep.mubr.f32.mxu0 0.0
      %465 = vmatmul.mubr.f32.gmra.mxu0 %v383
      %v466 = vpop.f32.mrf.mxu0
      %v467 = vadd.f32 %v273, %v466
      %v468 = vpop.f32.mrf.mxu0
      %v469 = vadd.f32 %v277, %v468
      %470 = vmatprep.mubr.f32.mxu0 0.0
      %471 = vmatmul.mubr.f32.gmra.mxu0 %v386
      %v472 = vpop.f32.mrf.mxu0
      %v473 = vadd.f32 %v273, %v472
      %v474 = vpop.f32.mrf.mxu0
      %v475 = vadd.f32 %v277, %v474
      %476 = vdwg.mxu0
      %477 = vmatprep.subr.mxu0 0.0
      %478 = vmatpush1.msra.mxu0 0.0
      %479 = vmatprep.subr.mxu0 0.0
      %480 = vmatpush1.msra.mxu0 0.0
      %481 = vmatprep.subr.mxu0 0.0
      %482 = vmatpush1.msra.mxu0 0.0
      %483 = vmatprep.subr.mxu0 0.0
      %484 = vmatpush1.msra.mxu0 0.0
      %485 = vmatprep.subr.mxu0 0.0
      %486 = vmatpush1.msra.mxu0 0.0
      %487 = vmatprep.subr.mxu0 0.0
      %488 = vmatpush1.msra.mxu0 0.0
      %489 = vmatprep.subr.mxu0 0.0
      %490 = vmatpush1.msra.mxu0 0.0
      %491 = vmatprep.subr.mxu0 0.0
      %492 = vmatpush1.msra.mxu0 0.0
      %493 = vmatprep.subr.mxu0 0.0
      %494 = vmatpush1.msra.mxu0 0.0
      %495 = vmatprep.subr.mxu0 0.0
      %496 = vmatpush1.msra.mxu0 0.0
      %497 = vmatprep.subr.mxu0 0.0
      %498 = vmatpush1.msra.mxu0 0.0
      %499 = vmatprep.subr.mxu0 0.0
      %500 = vmatpush1.msra.mxu0 0.0
      %501 = vmatprep.subr.mxu0 %v246
      %502 = vmatpush1.msra.mxu0 %v245
      %503 = vmatprep.subr.mxu0 %v225
      %504 = vmatpush1.msra.mxu0 %v224
      %505 = vmatprep.subr.mxu0 %v204
      %506 = vmatpush1.msra.mxu0 %v203
      %507 = vmatprep.subr.mxu0 %v183
      %508 = vmatpush1.msra.mxu0 %v182
      %509 = vmatprep.subr.mxu0 0.0
      %510 = vmatpush2.msra.mxu0 0.0
      %511 = vmatprep.subr.mxu0 0.0
      %512 = vmatpush2.msra.mxu0 0.0
      %513 = vmatprep.subr.mxu0 0.0
      %514 = vmatpush2.msra.mxu0 0.0
      %515 = vmatprep.subr.mxu0 0.0
      %516 = vmatpush2.msra.mxu0 0.0
      %517 = vmatprep.subr.mxu0 0.0
      %518 = vmatpush2.msra.mxu0 0.0
      %519 = vmatprep.subr.mxu0 0.0
      %520 = vmatpush2.msra.mxu0 0.0
      %521 = vmatprep.subr.mxu0 0.0
      %522 = vmatpush2.msra.mxu0 0.0
      %523 = vmatprep.subr.mxu0 0.0
      %524 = vmatpush2.msra.mxu0 0.0
      %525 = vmatprep.subr.mxu0 0.0
      %526 = vmatpush2.msra.mxu0 0.0
      %527 = vmatprep.subr.mxu0 0.0
      %528 = vmatpush2.msra.mxu0 0.0
      %529 = vmatprep.subr.mxu0 0.0
      %530 = vmatpush2.msra.mxu0 0.0
      %531 = vmatprep.subr.mxu0 0.0
      %532 = vmatpush2.msra.mxu0 0.0
      %533 = vmatprep.subr.mxu0 0.0
      %534 = vmatpush2.msra.mxu0 0.0
      %535 = vmatprep.subr.mxu0 0.0
      %536 = vmatpush2.msra.mxu0 0.0
      %537 = vmatprep.subr.mxu0 0.0
      %538 = vmatpush2.msra.mxu0 0.0
      %539 = vmatprep.subr.mxu0 0.0
      %540 = vmatpush2.msra.mxu0 0.0
      %541 = vmatprep.mubr.f32.mxu0 0.0
      %542 = vmatmul.mubr.f32.gmra.mxu0 %v377
      %v543 = vpop.f32.mrf.mxu0
      %v544 = vadd.f32 %v281, %v543
      %v545 = vpop.f32.mrf.mxu0
      %v546 = vadd.f32 %v285, %v545
      %547 = vmatprep.mubr.f32.mxu0 0.0
      %548 = vmatmul.mubr.f32.gmra.mxu0 %v380
      %v549 = vpop.f32.mrf.mxu0
      %v550 = vadd.f32 %v281, %v549
      %v551 = vpop.f32.mrf.mxu0
      %v552 = vadd.f32 %v285, %v551
      %553 = vmatprep.mubr.f32.mxu0 0.0
      %554 = vmatmul.mubr.f32.gmra.mxu0 %v383
      %v555 = vpop.f32.mrf.mxu0
      %v556 = vadd.f32 %v281, %v555
      %v557 = vpop.f32.mrf.mxu0
      %v558 = vadd.f32 %v285, %v557
      %559 = vmatprep.mubr.f32.mxu0 0.0
      %560 = vmatmul.mubr.f32.gmra.mxu0 %v386
      %v561 = vpop.f32.mrf.mxu0
      %v562 = vadd.f32 %v281, %v561
      %v563 = vpop.f32.mrf.mxu0
      %v564 = vadd.f32 %v285, %v563
      %565 = vdwg.mxu0
      %566 = vmatprep.subr.mxu0 0.0
      %567 = vmatpush1.msra.mxu0 0.0
      %568 = vmatprep.subr.mxu0 0.0
      %569 = vmatpush1.msra.mxu0 0.0
      %570 = vmatprep.subr.mxu0 0.0
      %571 = vmatpush1.msra.mxu0 0.0
      %572 = vmatprep.subr.mxu0 0.0
      %573 = vmatpush1.msra.mxu0 0.0
      %574 = vmatprep.subr.mxu0 0.0
      %575 = vmatpush1.msra.mxu0 0.0
      %576 = vmatprep.subr.mxu0 0.0
      %577 = vmatpush1.msra.mxu0 0.0
      %578 = vmatprep.subr.mxu0 0.0
      %579 = vmatpush1.msra.mxu0 0.0
      %580 = vmatprep.subr.mxu0 0.0
      %581 = vmatpush1.msra.mxu0 0.0
      %582 = vmatprep.subr.mxu0 0.0
      %583 = vmatpush1.msra.mxu0 0.0
      %584 = vmatprep.subr.mxu0 0.0
      %585 = vmatpush1.msra.mxu0 0.0
      %586 = vmatprep.subr.mxu0 0.0
      %587 = vmatpush1.msra.mxu0 0.0
      %588 = vmatprep.subr.mxu0 0.0
      %589 = vmatpush1.msra.mxu0 0.0
      %590 = vmatprep.subr.mxu0 %v248
      %591 = vmatpush1.msra.mxu0 %v247
      %592 = vmatprep.subr.mxu0 %v227
      %593 = vmatpush1.msra.mxu0 %v226
      %594 = vmatprep.subr.mxu0 %v206
      %595 = vmatpush1.msra.mxu0 %v205
      %596 = vmatprep.subr.mxu0 %v185
      %597 = vmatpush1.msra.mxu0 %v184
      %598 = vmatprep.subr.mxu0 0.0
      %599 = vmatpush2.msra.mxu0 0.0
      %600 = vmatprep.subr.mxu0 0.0
      %601 = vmatpush2.msra.mxu0 0.0
      %602 = vmatprep.subr.mxu0 0.0
      %603 = vmatpush2.msra.mxu0 0.0
      %604 = vmatprep.subr.mxu0 0.0
      %605 = vmatpush2.msra.mxu0 0.0
      %606 = vmatprep.subr.mxu0 0.0
      %607 = vmatpush2.msra.mxu0 0.0
      %608 = vmatprep.subr.mxu0 0.0
      %609 = vmatpush2.msra.mxu0 0.0
      %610 = vmatprep.subr.mxu0 0.0
      %611 = vmatpush2.msra.mxu0 0.0
      %612 = vmatprep.subr.mxu0 0.0
      %613 = vmatpush2.msra.mxu0 0.0
      %614 = vmatprep.subr.mxu0 0.0
      %615 = vmatpush2.msra.mxu0 0.0
      %616 = vmatprep.subr.mxu0 0.0
      %617 = vmatpush2.msra.mxu0 0.0
      %618 = vmatprep.subr.mxu0 0.0
      %619 = vmatpush2.msra.mxu0 0.0
      %620 = vmatprep.subr.mxu0 0.0
      %621 = vmatpush2.msra.mxu0 0.0
      %622 = vmatprep.subr.mxu0 0.0
      %623 = vmatpush2.msra.mxu0 0.0
      %624 = vmatprep.subr.mxu0 0.0
      %625 = vmatpush2.msra.mxu0 0.0
      %626 = vmatprep.subr.mxu0 0.0
      %627 = vmatpush2.msra.mxu0 0.0
      %628 = vmatprep.subr.mxu0 0.0
      %629 = vmatpush2.msra.mxu0 0.0
      %630 = vmatprep.mubr.f32.mxu0 0.0
      %631 = vmatmul.mubr.f32.gmra.mxu0 %v377
      %v632 = vpop.f32.mrf.mxu0
      %v633 = vadd.f32 %v289, %v632
      %v634 = vpop.f32.mrf.mxu0
      %v635 = vadd.f32 %v293, %v634
      %636 = vmatprep.mubr.f32.mxu0 0.0
      %637 = vmatmul.mubr.f32.gmra.mxu0 %v380
      %v638 = vpop.f32.mrf.mxu0
      %v639 = vadd.f32 %v289, %v638
      %v640 = vpop.f32.mrf.mxu0
      %v641 = vadd.f32 %v293, %v640
      %642 = vmatprep.mubr.f32.mxu0 0.0
      %643 = vmatmul.mubr.f32.gmra.mxu0 %v383
      %v644 = vpop.f32.mrf.mxu0
      %v645 = vadd.f32 %v289, %v644
      %v646 = vpop.f32.mrf.mxu0
      %v647 = vadd.f32 %v293, %v646
      %648 = vmatprep.mubr.f32.mxu0 0.0
      %649 = vmatmul.mubr.f32.gmra.mxu0 %v386
      %v650 = vpop.f32.mrf.mxu0
      %v651 = vadd.f32 %v289, %v650
      %v652 = vpop.f32.mrf.mxu0
      %v653 = vadd.f32 %v293, %v652
      %654 = vdwg.mxu0
      %655 = vmatprep.subr.mxu0 0.0
      %656 = vmatpush1.msra.mxu0 0.0
      %657 = vmatprep.subr.mxu0 0.0
      %658 = vmatpush1.msra.mxu0 0.0
      %659 = vmatprep.subr.mxu0 0.0
      %660 = vmatpush1.msra.mxu0 0.0
      %661 = vmatprep.subr.mxu0 0.0
      %662 = vmatpush1.msra.mxu0 0.0
      %663 = vmatprep.subr.mxu0 0.0
      %664 = vmatpush1.msra.mxu0 0.0
      %665 = vmatprep.subr.mxu0 0.0
      %666 = vmatpush1.msra.mxu0 0.0
      %667 = vmatprep.subr.mxu0 0.0
      %668 = vmatpush1.msra.mxu0 0.0
      %669 = vmatprep.subr.mxu0 0.0
      %670 = vmatpush1.msra.mxu0 0.0
      %671 = vmatprep.subr.mxu0 0.0
      %672 = vmatpush1.msra.mxu0 0.0
      %673 = vmatprep.subr.mxu0 0.0
      %674 = vmatpush1.msra.mxu0 0.0
      %675 = vmatprep.subr.mxu0 0.0
      %676 = vmatpush1.msra.mxu0 0.0
      %677 = vmatprep.subr.mxu0 0.0
      %678 = vmatpush1.msra.mxu0 0.0
      %679 = vmatprep.subr.mxu0 %v250
      %680 = vmatpush1.msra.mxu0 %v249
      %681 = vmatprep.subr.mxu0 %v229
      %682 = vmatpush1.msra.mxu0 %v228
      %683 = vmatprep.subr.mxu0 %v208
      %684 = vmatpush1.msra.mxu0 %v207
      %685 = vmatprep.subr.mxu0 %v187
      %686 = vmatpush1.msra.mxu0 %v186
      %687 = vmatprep.subr.mxu0 0.0
      %688 = vmatpush2.msra.mxu0 0.0
      %689 = vmatprep.subr.mxu0 0.0
      %690 = vmatpush2.msra.mxu0 0.0
      %691 = vmatprep.subr.mxu0 0.0
      %692 = vmatpush2.msra.mxu0 0.0
      %693 = vmatprep.subr.mxu0 0.0
      %694 = vmatpush2.msra.mxu0 0.0
      %695 = vmatprep.subr.mxu0 0.0
      %696 = vmatpush2.msra.mxu0 0.0
      %697 = vmatprep.subr.mxu0 0.0
      %698 = vmatpush2.msra.mxu0 0.0
      %699 = vmatprep.subr.mxu0 0.0
      %700 = vmatpush2.msra.mxu0 0.0
      %701 = vmatprep.subr.mxu0 0.0
      %702 = vmatpush2.msra.mxu0 0.0
      %703 = vmatprep.subr.mxu0 0.0
      %704 = vmatpush2.msra.mxu0 0.0
      %705 = vmatprep.subr.mxu0 0.0
      %706 = vmatpush2.msra.mxu0 0.0
      %707 = vmatprep.subr.mxu0 0.0
      %708 = vmatpush2.msra.mxu0 0.0
      %709 = vmatprep.subr.mxu0 0.0
      %710 = vmatpush2.msra.mxu0 0.0
      %711 = vmatprep.subr.mxu0 0.0
      %712 = vmatpush2.msra.mxu0 0.0
      %713 = vmatprep.subr.mxu0 0.0
      %714 = vmatpush2.msra.mxu0 0.0
      %715 = vmatprep.subr.mxu0 0.0
      %716 = vmatpush2.msra.mxu0 0.0
      %717 = vmatprep.subr.mxu0 0.0
      %718 = vmatpush2.msra.mxu0 0.0
      %719 = vmatprep.mubr.f32.mxu0 0.0
      %720 = vmatmul.mubr.f32.gmra.mxu0 %v377
      %v721 = vpop.f32.mrf.mxu0
      %v722 = vadd.f32 %v297, %v721
      %v723 = vpop.f32.mrf.mxu0
      %v724 = vadd.f32 %v301, %v723
      %725 = vmatprep.mubr.f32.mxu0 0.0
      %726 = vmatmul.mubr.f32.gmra.mxu0 %v380
      %v727 = vpop.f32.mrf.mxu0
      %v728 = vadd.f32 %v297, %v727
      %v729 = vpop.f32.mrf.mxu0
      %v730 = vadd.f32 %v301, %v729
      %731 = vmatprep.mubr.f32.mxu0 0.0
      %732 = vmatmul.mubr.f32.gmra.mxu0 %v383
      %v733 = vpop.f32.mrf.mxu0
      %v734 = vadd.f32 %v297, %v733
      %v735 = vpop.f32.mrf.mxu0
      %v736 = vadd.f32 %v301, %v735
      %737 = vmatprep.mubr.f32.mxu0 0.0
      %738 = vmatmul.mubr.f32.gmra.mxu0 %v386
      %v739 = vpop.f32.mrf.mxu0
      %v740 = vadd.f32 %v297, %v739
      %v741 = vpop.f32.mrf.mxu0
      %v742 = vadd.f32 %v301, %v741
      %743 = vdwg.mxu0
      %744 = vmatprep.subr.mxu0 0.0
      %745 = vmatpush1.msra.mxu0 0.0
      %746 = vmatprep.subr.mxu0 0.0
      %747 = vmatpush1.msra.mxu0 0.0
      %748 = vmatprep.subr.mxu0 0.0
      %749 = vmatpush1.msra.mxu0 0.0
      %750 = vmatprep.subr.mxu0 0.0
      %751 = vmatpush1.msra.mxu0 0.0
      %752 = vmatprep.subr.mxu0 0.0
      %753 = vmatpush1.msra.mxu0 0.0
      %754 = vmatprep.subr.mxu0 0.0
      %755 = vmatpush1.msra.mxu0 0.0
      %756 = vmatprep.subr.mxu0 0.0
      %757 = vmatpush1.msra.mxu0 0.0
      %758 = vmatprep.subr.mxu0 0.0
      %759 = vmatpush1.msra.mxu0 0.0
      %760 = vmatprep.subr.mxu0 0.0
      %761 = vmatpush1.msra.mxu0 0.0
      %762 = vmatprep.subr.mxu0 0.0
      %763 = vmatpush1.msra.mxu0 0.0
      %764 = vmatprep.subr.mxu0 0.0
      %765 = vmatpush1.msra.mxu0 0.0
      %766 = vmatprep.subr.mxu0 0.0
      %767 = vmatpush1.msra.mxu0 0.0
      %768 = vmatprep.subr.mxu0 %v252
      %769 = vmatpush1.msra.mxu0 %v251
      %770 = vmatprep.subr.mxu0 %v231
      %771 = vmatpush1.msra.mxu0 %v230
      %772 = vmatprep.subr.mxu0 %v210
      %773 = vmatpush1.msra.mxu0 %v209
      %774 = vmatprep.subr.mxu0 %v189
      %775 = vmatpush1.msra.mxu0 %v188
      %776 = vmatprep.subr.mxu0 0.0
      %777 = vmatpush2.msra.mxu0 0.0
      %778 = vmatprep.subr.mxu0 0.0
      %779 = vmatpush2.msra.mxu0 0.0
      %780 = vmatprep.subr.mxu0 0.0
      %781 = vmatpush2.msra.mxu0 0.0
      %782 = vmatprep.subr.mxu0 0.0
      %783 = vmatpush2.msra.mxu0 0.0
      %784 = vmatprep.subr.mxu0 0.0
      %785 = vmatpush2.msra.mxu0 0.0
      %786 = vmatprep.subr.mxu0 0.0
      %787 = vmatpush2.msra.mxu0 0.0
      %788 = vmatprep.subr.mxu0 0.0
      %789 = vmatpush2.msra.mxu0 0.0
      %790 = vmatprep.subr.mxu0 0.0
      %791 = vmatpush2.msra.mxu0 0.0
      %792 = vmatprep.subr.mxu0 0.0
      %793 = vmatpush2.msra.mxu0 0.0
      %794 = vmatprep.subr.mxu0 0.0
      %795 = vmatpush2.msra.mxu0 0.0
      %796 = vmatprep.subr.mxu0 0.0
      %797 = vmatpush2.msra.mxu0 0.0
      %798 = vmatprep.subr.mxu0 0.0
      %799 = vmatpush2.msra.mxu0 0.0
      %800 = vmatprep.subr.mxu0 0.0
      %801 = vmatpush2.msra.mxu0 0.0
      %802 = vmatprep.subr.mxu0 0.0
      %803 = vmatpush2.msra.mxu0 0.0
      %804 = vmatprep.subr.mxu0 0.0
      %805 = vmatpush2.msra.mxu0 0.0
      %806 = vmatprep.subr.mxu0 0.0
      %807 = vmatpush2.msra.mxu0 0.0
      %808 = vmatprep.mubr.f32.mxu0 0.0
      %809 = vmatmul.mubr.f32.gmra.mxu0 %v377
      %v810 = vpop.f32.mrf.mxu0
      %v811 = vadd.f32 %v305, %v810
      %v812 = vpop.f32.mrf.mxu0
      %v813 = vadd.f32 %v309, %v812
      %814 = vmatprep.mubr.f32.mxu0 0.0
      %815 = vmatmul.mubr.f32.gmra.mxu0 %v380
      %v816 = vpop.f32.mrf.mxu0
      %v817 = vadd.f32 %v305, %v816
      %v818 = vpop.f32.mrf.mxu0
      %v819 = vadd.f32 %v309, %v818
      %820 = vmatprep.mubr.f32.mxu0 0.0
      %821 = vmatmul.mubr.f32.gmra.mxu0 %v383
      %v822 = vpop.f32.mrf.mxu0
      %v823 = vadd.f32 %v305, %v822
      %v824 = vpop.f32.mrf.mxu0
      %v825 = vadd.f32 %v309, %v824
      %826 = vmatprep.mubr.f32.mxu0 0.0
      %827 = vmatmul.mubr.f32.gmra.mxu0 %v386
      %v828 = vpop.f32.mrf.mxu0
      %v829 = vadd.f32 %v305, %v828
      %v830 = vpop.f32.mrf.mxu0
      %v831 = vadd.f32 %v309, %v830
      %832 = vdwg.mxu0
      %833 = vmatprep.subr.mxu0 0.0
      %834 = vmatpush1.msra.mxu0 0.0
      %835 = vmatprep.subr.mxu0 0.0
      %836 = vmatpush1.msra.mxu0 0.0
      %837 = vmatprep.subr.mxu0 0.0
      %838 = vmatpush1.msra.mxu0 0.0
      %839 = vmatprep.subr.mxu0 0.0
      %840 = vmatpush1.msra.mxu0 0.0
      %841 = vmatprep.subr.mxu0 0.0
      %842 = vmatpush1.msra.mxu0 0.0
      %843 = vmatprep.subr.mxu0 0.0
      %844 = vmatpush1.msra.mxu0 0.0
      %845 = vmatprep.subr.mxu0 0.0
      %846 = vmatpush1.msra.mxu0 0.0
      %847 = vmatprep.subr.mxu0 0.0
      %848 = vmatpush1.msra.mxu0 0.0
      %849 = vmatprep.subr.mxu0 0.0
      %850 = vmatpush1.msra.mxu0 0.0
      %851 = vmatprep.subr.mxu0 0.0
      %852 = vmatpush1.msra.mxu0 0.0
      %853 = vmatprep.subr.mxu0 0.0
      %854 = vmatpush1.msra.mxu0 0.0
      %855 = vmatprep.subr.mxu0 0.0
      %856 = vmatpush1.msra.mxu0 0.0
      %857 = vmatprep.subr.mxu0 %v254
      %858 = vmatpush1.msra.mxu0 %v253
      %859 = vmatprep.subr.mxu0 %v233
      %860 = vmatpush1.msra.mxu0 %v232
      %861 = vmatprep.subr.mxu0 %v212
      %862 = vmatpush1.msra.mxu0 %v211
      %863 = vmatprep.subr.mxu0 %v191
      %864 = vmatpush1.msra.mxu0 %v190
      %865 = vmatprep.subr.mxu0 0.0
      %866 = vmatpush2.msra.mxu0 0.0
      %867 = vmatprep.subr.mxu0 0.0
      %868 = vmatpush2.msra.mxu0 0.0
      %869 = vmatprep.subr.mxu0 0.0
      %870 = vmatpush2.msra.mxu0 0.0
      %871 = vmatprep.subr.mxu0 0.0
      %872 = vmatpush2.msra.mxu0 0.0
      %873 = vmatprep.subr.mxu0 0.0
      %874 = vmatpush2.msra.mxu0 0.0
      %875 = vmatprep.subr.mxu0 0.0
      %876 = vmatpush2.msra.mxu0 0.0
      %877 = vmatprep.subr.mxu0 0.0
      %878 = vmatpush2.msra.mxu0 0.0
      %879 = vmatprep.subr.mxu0 0.0
      %880 = vmatpush2.msra.mxu0 0.0
      %881 = vmatprep.subr.mxu0 0.0
      %882 = vmatpush2.msra.mxu0 0.0
      %883 = vmatprep.subr.mxu0 0.0
      %884 = vmatpush2.msra.mxu0 0.0
      %885 = vmatprep.subr.mxu0 0.0
      %886 = vmatpush2.msra.mxu0 0.0
      %887 = vmatprep.subr.mxu0 0.0
      %888 = vmatpush2.msra.mxu0 0.0
      %889 = vmatprep.subr.mxu0 0.0
      %890 = vmatpush2.msra.mxu0 0.0
      %891 = vmatprep.subr.mxu0 0.0
      %892 = vmatpush2.msra.mxu0 0.0
      %893 = vmatprep.subr.mxu0 0.0
      %894 = vmatpush2.msra.mxu0 0.0
      %895 = vmatprep.subr.mxu0 0.0
      %896 = vmatpush2.msra.mxu0 0.0
      %897 = vmatprep.mubr.f32.mxu0 0.0
      %898 = vmatmul.mubr.f32.gmra.mxu0 %v377
      %v899 = vpop.f32.mrf.mxu0
      %v900 = vadd.f32 %v313, %v899
      %v901 = vpop.f32.mrf.mxu0
      %v902 = vadd.f32 %v317, %v901
      %903 = vmatprep.mubr.f32.mxu0 0.0
      %904 = vmatmul.mubr.f32.gmra.mxu0 %v380
      %v905 = vpop.f32.mrf.mxu0
      %v906 = vadd.f32 %v313, %v905
      %v907 = vpop.f32.mrf.mxu0
      %v908 = vadd.f32 %v317, %v907
      %909 = vmatprep.mubr.f32.mxu0 0.0
      %910 = vmatmul.mubr.f32.gmra.mxu0 %v383
      %v911 = vpop.f32.mrf.mxu0
      %v912 = vadd.f32 %v313, %v911
      %v913 = vpop.f32.mrf.mxu0
      %v914 = vadd.f32 %v317, %v913
      %915 = vmatprep.mubr.f32.mxu0 0.0
      %916 = vmatmul.mubr.f32.gmra.mxu0 %v386
      %v917 = vpop.f32.mrf.mxu0
      %v918 = vadd.f32 %v313, %v917
      %v919 = vpop.f32.mrf.mxu0
      %v920 = vadd.f32 %v317, %v919
      %921 = vdwg.mxu0
      %922 = vmatprep.subr.mxu0 0.0
      %923 = vmatpush1.msra.mxu0 0.0
      %924 = vmatprep.subr.mxu0 0.0
      %925 = vmatpush1.msra.mxu0 0.0
      %926 = vmatprep.subr.mxu0 0.0
      %927 = vmatpush1.msra.mxu0 0.0
      %928 = vmatprep.subr.mxu0 0.0
      %929 = vmatpush1.msra.mxu0 0.0
      %930 = vmatprep.subr.mxu0 0.0
      %931 = vmatpush1.msra.mxu0 0.0
      %932 = vmatprep.subr.mxu0 0.0
      %933 = vmatpush1.msra.mxu0 0.0
      %934 = vmatprep.subr.mxu0 0.0
      %935 = vmatpush1.msra.mxu0 0.0
      %936 = vmatprep.subr.mxu0 0.0
      %937 = vmatpush1.msra.mxu0 0.0
      %938 = vmatprep.subr.mxu0 0.0
      %939 = vmatpush1.msra.mxu0 0.0
      %940 = vmatprep.subr.mxu0 0.0
      %941 = vmatpush1.msra.mxu0 0.0
      %942 = vmatprep.subr.mxu0 0.0
      %943 = vmatpush1.msra.mxu0 0.0
      %944 = vmatprep.subr.mxu0 0.0
      %945 = vmatpush1.msra.mxu0 0.0
      %946 = vmatprep.subr.mxu0 %v256
      %947 = vmatpush1.msra.mxu0 %v255
      %948 = vmatprep.subr.mxu0 %v235
      %949 = vmatpush1.msra.mxu0 %v234
      %950 = vmatprep.subr.mxu0 %v214
      %951 = vmatpush1.msra.mxu0 %v213
      %952 = vmatprep.subr.mxu0 %v193
      %953 = vmatpush1.msra.mxu0 %v192
      %954 = vmatprep.subr.mxu0 0.0
      %955 = vmatpush2.msra.mxu0 0.0
      %956 = vmatprep.subr.mxu0 0.0
      %957 = vmatpush2.msra.mxu0 0.0
      %958 = vmatprep.subr.mxu0 0.0
      %959 = vmatpush2.msra.mxu0 0.0
      %960 = vmatprep.subr.mxu0 0.0
      %961 = vmatpush2.msra.mxu0 0.0
      %962 = vmatprep.subr.mxu0 0.0
      %963 = vmatpush2.msra.mxu0 0.0
      %964 = vmatprep.subr.mxu0 0.0
      %965 = vmatpush2.msra.mxu0 0.0
      %966 = vmatprep.subr.mxu0 0.0
      %967 = vmatpush2.msra.mxu0 0.0
      %968 = vmatprep.subr.mxu0 0.0
      %969 = vmatpush2.msra.mxu0 0.0
      %970 = vmatprep.subr.mxu0 0.0
      %971 = vmatpush2.msra.mxu0 0.0
      %972 = vmatprep.subr.mxu0 0.0
      %973 = vmatpush2.msra.mxu0 0.0
      %974 = vmatprep.subr.mxu0 0.0
      %975 = vmatpush2.msra.mxu0 0.0
      %976 = vmatprep.subr.mxu0 0.0
      %977 = vmatpush2.msra.mxu0 0.0
      %978 = vmatprep.subr.mxu0 0.0
      %979 = vmatpush2.msra.mxu0 0.0
      %980 = vmatprep.subr.mxu0 0.0
      %981 = vmatpush2.msra.mxu0 0.0
      %982 = vmatprep.subr.mxu0 0.0
      %983 = vmatpush2.msra.mxu0 0.0
      %984 = vmatprep.subr.mxu0 0.0
      %985 = vmatpush2.msra.mxu0 0.0
      %986 = vmatprep.mubr.f32.mxu0 0.0
      %987 = vmatmul.mubr.f32.gmra.mxu0 %v377
      %v988 = vpop.f32.mrf.mxu0
      %v989 = vadd.f32 %v321, %v988
      %v990 = vpop.f32.mrf.mxu0
      %v991 = vadd.f32 %v325, %v990
      %992 = vmatprep.mubr.f32.mxu0 0.0
      %993 = vmatmul.mubr.f32.gmra.mxu0 %v380
      %v994 = vpop.f32.mrf.mxu0
      %v995 = vadd.f32 %v321, %v994
      %v996 = vpop.f32.mrf.mxu0
      %v997 = vadd.f32 %v325, %v996
      %998 = vmatprep.mubr.f32.mxu0 0.0
      %999 = vmatmul.mubr.f32.gmra.mxu0 %v383
      %v1000 = vpop.f32.mrf.mxu0
      %v1001 = vadd.f32 %v321, %v1000
      %v1002 = vpop.f32.mrf.mxu0
      %v1003 = vadd.f32 %v325, %v1002
      %1004 = vmatprep.mubr.f32.mxu0 0.0
      %1005 = vmatmul.mubr.f32.gmra.mxu0 %v386
      %v1006 = vpop.f32.mrf.mxu0
      %v1007 = vadd.f32 %v321, %v1006
      %v1008 = vpop.f32.mrf.mxu0
      %v1009 = vadd.f32 %v325, %v1008
      %1010 = vdwg.mxu0
      %1011 = vmatprep.subr.mxu0 0.0
      %1012 = vmatpush1.msra.mxu0 0.0
      %1013 = vmatprep.subr.mxu0 0.0
      %1014 = vmatpush1.msra.mxu0 0.0
      %1015 = vmatprep.subr.mxu0 0.0
      %1016 = vmatpush1.msra.mxu0 0.0
      %1017 = vmatprep.subr.mxu0 0.0
      %1018 = vmatpush1.msra.mxu0 0.0
      %1019 = vmatprep.subr.mxu0 0.0
      %1020 = vmatpush1.msra.mxu0 0.0
      %1021 = vmatprep.subr.mxu0 0.0
      %1022 = vmatpush1.msra.mxu0 0.0
      %1023 = vmatprep.subr.mxu0 0.0
      %1024 = vmatpush1.msra.mxu0 0.0
      %1025 = vmatprep.subr.mxu0 0.0
      %1026 = vmatpush1.msra.mxu0 0.0
      %1027 = vmatprep.subr.mxu0 0.0
      %1028 = vmatpush1.msra.mxu0 0.0
      %1029 = vmatprep.subr.mxu0 0.0
      %1030 = vmatpush1.msra.mxu0 0.0
      %1031 = vmatprep.subr.mxu0 0.0
      %1032 = vmatpush1.msra.mxu0 0.0
      %1033 = vmatprep.subr.mxu0 0.0
      %1034 = vmatpush1.msra.mxu0 0.0
      %1035 = vmatprep.subr.mxu0 %v258
      %1036 = vmatpush1.msra.mxu0 %v257
      %1037 = vmatprep.subr.mxu0 %v237
      %1038 = vmatpush1.msra.mxu0 %v236
      %1039 = vmatprep.subr.mxu0 %v216
      %1040 = vmatpush1.msra.mxu0 %v215
      %1041 = vmatprep.subr.mxu0 %v195
      %1042 = vmatpush1.msra.mxu0 %v194
      %1043 = vmatprep.subr.mxu0 0.0
      %1044 = vmatpush2.msra.mxu0 0.0
      %1045 = vmatprep.subr.mxu0 0.0
      %1046 = vmatpush2.msra.mxu0 0.0
      %1047 = vmatprep.subr.mxu0 0.0
      %1048 = vmatpush2.msra.mxu0 0.0
      %1049 = vmatprep.subr.mxu0 0.0
      %1050 = vmatpush2.msra.mxu0 0.0
      %1051 = vmatprep.subr.mxu0 0.0
      %1052 = vmatpush2.msra.mxu0 0.0
      %1053 = vmatprep.subr.mxu0 0.0
      %1054 = vmatpush2.msra.mxu0 0.0
      %1055 = vmatprep.subr.mxu0 0.0
      %1056 = vmatpush2.msra.mxu0 0.0
      %1057 = vmatprep.subr.mxu0 0.0
      %1058 = vmatpush2.msra.mxu0 0.0
      %1059 = vmatprep.subr.mxu0 0.0
      %1060 = vmatpush2.msra.mxu0 0.0
      %1061 = vmatprep.subr.mxu0 0.0
      %1062 = vmatpush2.msra.mxu0 0.0
      %1063 = vmatprep.subr.mxu0 0.0
      %1064 = vmatpush2.msra.mxu0 0.0
      %1065 = vmatprep.subr.mxu0 0.0
      %1066 = vmatpush2.msra.mxu0 0.0
      %1067 = vmatprep.subr.mxu0 0.0
      %1068 = vmatpush2.msra.mxu0 0.0
      %1069 = vmatprep.subr.mxu0 0.0
      %1070 = vmatpush2.msra.mxu0 0.0
      %1071 = vmatprep.subr.mxu0 0.0
      %1072 = vmatpush2.msra.mxu0 0.0
      %1073 = vmatprep.subr.mxu0 0.0
      %1074 = vmatpush2.msra.mxu0 0.0
      %1075 = vmatprep.mubr.f32.mxu0 0.0
      %1076 = vmatmul.mubr.f32.gmra.mxu0 %v377
      %v1077 = vpop.f32.mrf.mxu0
      %v1078 = vadd.f32 %v329, %v1077
      %v1079 = vpop.f32.mrf.mxu0
      %v1080 = vadd.f32 %v333, %v1079
      %1081 = vmatprep.mubr.f32.mxu0 0.0
      %1082 = vmatmul.mubr.f32.gmra.mxu0 %v380
      %v1083 = vpop.f32.mrf.mxu0
      %v1084 = vadd.f32 %v329, %v1083
      %v1085 = vpop.f32.mrf.mxu0
      %v1086 = vadd.f32 %v333, %v1085
      %1087 = vmatprep.mubr.f32.mxu0 0.0
      %1088 = vmatmul.mubr.f32.gmra.mxu0 %v383
      %v1089 = vpop.f32.mrf.mxu0
      %v1090 = vadd.f32 %v329, %v1089
      %v1091 = vpop.f32.mrf.mxu0
      %v1092 = vadd.f32 %v333, %v1091
      %1093 = vmatprep.mubr.f32.mxu0 0.0
      %1094 = vmatmul.mubr.f32.gmra.mxu0 %v386
      %v1095 = vpop.f32.mrf.mxu0
      %v1096 = vadd.f32 %v329, %v1095
      %v1097 = vpop.f32.mrf.mxu0
      %v1098 = vadd.f32 %v333, %v1097
      %1099 = vdwg.mxu0
      %1100 = vmatprep.subr.mxu0 0.0
      %1101 = vmatpush1.msra.mxu0 0.0
      %1102 = vmatprep.subr.mxu0 0.0
      %1103 = vmatpush1.msra.mxu0 0.0
      %1104 = vmatprep.subr.mxu0 0.0
      %1105 = vmatpush1.msra.mxu0 0.0
      %1106 = vmatprep.subr.mxu0 0.0
      %1107 = vmatpush1.msra.mxu0 0.0
      %1108 = vmatprep.subr.mxu0 0.0
      %1109 = vmatpush1.msra.mxu0 0.0
      %1110 = vmatprep.subr.mxu0 0.0
      %1111 = vmatpush1.msra.mxu0 0.0
      %1112 = vmatprep.subr.mxu0 0.0
      %1113 = vmatpush1.msra.mxu0 0.0
      %1114 = vmatprep.subr.mxu0 0.0
      %1115 = vmatpush1.msra.mxu0 0.0
      %1116 = vmatprep.subr.mxu0 0.0
      %1117 = vmatpush1.msra.mxu0 0.0
      %1118 = vmatprep.subr.mxu0 0.0
      %1119 = vmatpush1.msra.mxu0 0.0
      %1120 = vmatprep.subr.mxu0 0.0
      %1121 = vmatpush1.msra.mxu0 0.0
      %1122 = vmatprep.subr.mxu0 0.0
      %1123 = vmatpush1.msra.mxu0 0.0
      %1124 = vmatprep.subr.mxu0 %v260
      %1125 = vmatpush1.msra.mxu0 %v259
      %1126 = vmatprep.subr.mxu0 %v239
      %1127 = vmatpush1.msra.mxu0 %v238
      %1128 = vmatprep.subr.mxu0 %v218
      %1129 = vmatpush1.msra.mxu0 %v217
      %1130 = vmatprep.subr.mxu0 %v197
      %1131 = vmatpush1.msra.mxu0 %v196
      %1132 = vmatprep.subr.mxu0 0.0
      %1133 = vmatpush2.msra.mxu0 0.0
      %1134 = vmatprep.subr.mxu0 0.0
      %1135 = vmatpush2.msra.mxu0 0.0
      %1136 = vmatprep.subr.mxu0 0.0
      %1137 = vmatpush2.msra.mxu0 0.0
      %1138 = vmatprep.subr.mxu0 0.0
      %1139 = vmatpush2.msra.mxu0 0.0
      %1140 = vmatprep.subr.mxu0 0.0
      %1141 = vmatpush2.msra.mxu0 0.0
      %1142 = vmatprep.subr.mxu0 0.0
      %1143 = vmatpush2.msra.mxu0 0.0
      %1144 = vmatprep.subr.mxu0 0.0
      %1145 = vmatpush2.msra.mxu0 0.0
      %1146 = vmatprep.subr.mxu0 0.0
      %1147 = vmatpush2.msra.mxu0 0.0
      %1148 = vmatprep.subr.mxu0 0.0
      %1149 = vmatpush2.msra.mxu0 0.0
      %1150 = vmatprep.subr.mxu0 0.0
      %1151 = vmatpush2.msra.mxu0 0.0
      %1152 = vmatprep.subr.mxu0 0.0
      %1153 = vmatpush2.msra.mxu0 0.0
      %1154 = vmatprep.subr.mxu0 0.0
      %1155 = vmatpush2.msra.mxu0 0.0
      %1156 = vmatprep.subr.mxu0 0.0
      %1157 = vmatpush2.msra.mxu0 0.0
      %1158 = vmatprep.subr.mxu0 0.0
      %1159 = vmatpush2.msra.mxu0 0.0
      %1160 = vmatprep.subr.mxu0 0.0
      %1161 = vmatpush2.msra.mxu0 0.0
      %1162 = vmatprep.subr.mxu0 0.0
      %1163 = vmatpush2.msra.mxu0 0.0
      %1164 = vmatprep.mubr.f32.mxu0 0.0
      %1165 = vmatmul.mubr.f32.gmra.mxu0 %v377
      %v1166 = vpop.f32.mrf.mxu0
      %v1167 = vadd.f32 %v337, %v1166
      %v1168 = vpop.f32.mrf.mxu0
      %v1169 = vadd.f32 %v341, %v1168
      %1170 = vmatprep.mubr.f32.mxu0 0.0
      %1171 = vmatmul.mubr.f32.gmra.mxu0 %v380
      %v1172 = vpop.f32.mrf.mxu0
      %v1173 = vadd.f32 %v337, %v1172
      %v1174 = vpop.f32.mrf.mxu0
      %v1175 = vadd.f32 %v341, %v1174
      %1176 = vmatprep.mubr.f32.mxu0 0.0
      %1177 = vmatmul.mubr.f32.gmra.mxu0 %v383
      %v1178 = vpop.f32.mrf.mxu0
      %v1179 = vadd.f32 %v337, %v1178
      %v1180 = vpop.f32.mrf.mxu0
      %v1181 = vadd.f32 %v341, %v1180
      %1182 = vmatprep.mubr.f32.mxu0 0.0
      %1183 = vmatmul.mubr.f32.gmra.mxu0 %v386
      %v1184 = vpop.f32.mrf.mxu0
      %v1185 = vadd.f32 %v337, %v1184
      %v1186 = vpop.f32.mrf.mxu0
      %v1187 = vadd.f32 %v341, %v1186
      %1188 = vdwg.mxu0
      %1189 = vmatprep.subr.mxu0 0.0
      %1190 = vmatpush1.msra.mxu0 0.0
      %1191 = vmatprep.subr.mxu0 0.0
      %1192 = vmatpush1.msra.mxu0 0.0
      %1193 = vmatprep.subr.mxu0 0.0
      %1194 = vmatpush1.msra.mxu0 0.0
      %1195 = vmatprep.subr.mxu0 0.0
      %1196 = vmatpush1.msra.mxu0 0.0
      %1197 = vmatprep.subr.mxu0 0.0
      %1198 = vmatpush1.msra.mxu0 0.0
      %1199 = vmatprep.subr.mxu0 0.0
      %1200 = vmatpush1.msra.mxu0 0.0
      %1201 = vmatprep.subr.mxu0 0.0
      %1202 = vmatpush1.msra.mxu0 0.0
      %1203 = vmatprep.subr.mxu0 0.0
      %1204 = vmatpush1.msra.mxu0 0.0
      %1205 = vmatprep.subr.mxu0 0.0
      %1206 = vmatpush1.msra.mxu0 0.0
      %1207 = vmatprep.subr.mxu0 0.0
      %1208 = vmatpush1.msra.mxu0 0.0
      %1209 = vmatprep.subr.mxu0 0.0
      %1210 = vmatpush1.msra.mxu0 0.0
      %1211 = vmatprep.subr.mxu0 0.0
      %1212 = vmatpush1.msra.mxu0 0.0
      %1213 = vmatprep.subr.mxu0 %v262
      %1214 = vmatpush1.msra.mxu0 %v261
      %1215 = vmatprep.subr.mxu0 %v241
      %1216 = vmatpush1.msra.mxu0 %v240
      %1217 = vmatprep.subr.mxu0 %v220
      %1218 = vmatpush1.msra.mxu0 %v219
      %1219 = vmatprep.subr.mxu0 %v199
      %1220 = vmatpush1.msra.mxu0 %v198
      %1221 = vmatprep.subr.mxu0 0.0
      %1222 = vmatpush2.msra.mxu0 0.0
      %1223 = vmatprep.subr.mxu0 0.0
      %1224 = vmatpush2.msra.mxu0 0.0
      %1225 = vmatprep.subr.mxu0 0.0
      %1226 = vmatpush2.msra.mxu0 0.0
      %1227 = vmatprep.subr.mxu0 0.0
      %1228 = vmatpush2.msra.mxu0 0.0
      %1229 = vmatprep.subr.mxu0 0.0
      %1230 = vmatpush2.msra.mxu0 0.0
      %1231 = vmatprep.subr.mxu0 0.0
      %1232 = vmatpush2.msra.mxu0 0.0
      %1233 = vmatprep.subr.mxu0 0.0
      %1234 = vmatpush2.msra.mxu0 0.0
      %1235 = vmatprep.subr.mxu0 0.0
      %1236 = vmatpush2.msra.mxu0 0.0
      %1237 = vmatprep.subr.mxu0 0.0
      %1238 = vmatpush2.msra.mxu0 0.0
      %1239 = vmatprep.subr.mxu0 0.0
      %1240 = vmatpush2.msra.mxu0 0.0
      %1241 = vmatprep.subr.mxu0 0.0
      %1242 = vmatpush2.msra.mxu0 0.0
      %1243 = vmatprep.subr.mxu0 0.0
      %1244 = vmatpush2.msra.mxu0 0.0
      %1245 = vmatprep.subr.mxu0 0.0
      %1246 = vmatpush2.msra.mxu0 0.0
      %1247 = vmatprep.subr.mxu0 0.0
      %1248 = vmatpush2.msra.mxu0 0.0
      %1249 = vmatprep.subr.mxu0 0.0
      %1250 = vmatpush2.msra.mxu0 0.0
      %1251 = vmatprep.subr.mxu0 0.0
      %1252 = vmatpush2.msra.mxu0 0.0
      %1253 = vmatprep.mubr.f32.mxu0 0.0
      %1254 = vmatmul.mubr.f32.gmra.mxu0 %v377
      %v1255 = vpop.f32.mrf.mxu0
      %v1256 = vadd.f32 %v345, %v1255
      %v1257 = vpop.f32.mrf.mxu0
      %v1258 = vadd.f32 %v349, %v1257
      %1259 = vmatprep.mubr.f32.mxu0 0.0
      %1260 = vmatmul.mubr.f32.gmra.mxu0 %v380
      %v1261 = vpop.f32.mrf.mxu0
      %v1262 = vadd.f32 %v345, %v1261
      %v1263 = vpop.f32.mrf.mxu0
      %v1264 = vadd.f32 %v349, %v1263
      %1265 = vmatprep.mubr.f32.mxu0 0.0
      %1266 = vmatmul.mubr.f32.gmra.mxu0 %v383
      %v1267 = vpop.f32.mrf.mxu0
      %v1268 = vadd.f32 %v345, %v1267
      %v1269 = vpop.f32.mrf.mxu0
      %v1270 = vadd.f32 %v349, %v1269
      %1271 = vmatprep.mubr.f32.mxu0 0.0
      %1272 = vmatmul.mubr.f32.gmra.mxu0 %v386
      %v1273 = vpop.f32.mrf.mxu0
      %v1274 = vadd.f32 %v345, %v1273
      %v1275 = vpop.f32.mrf.mxu0
      %v1276 = vadd.f32 %v349, %v1275
      %1277 = vdwg.mxu0
      %1278 = vmatprep.subr.mxu0 0.0
      %1279 = vmatpush1.msra.mxu0 0.0
      %1280 = vmatprep.subr.mxu0 0.0
      %1281 = vmatpush1.msra.mxu0 0.0
      %1282 = vmatprep.subr.mxu0 0.0
      %1283 = vmatpush1.msra.mxu0 0.0
      %1284 = vmatprep.subr.mxu0 0.0
      %1285 = vmatpush1.msra.mxu0 0.0
      %1286 = vmatprep.subr.mxu0 0.0
      %1287 = vmatpush1.msra.mxu0 0.0
      %1288 = vmatprep.subr.mxu0 0.0
      %1289 = vmatpush1.msra.mxu0 0.0
      %1290 = vmatprep.subr.mxu0 0.0
      %1291 = vmatpush1.msra.mxu0 0.0
      %1292 = vmatprep.subr.mxu0 0.0
      %1293 = vmatpush1.msra.mxu0 0.0
      %1294 = vmatprep.subr.mxu0 0.0
      %1295 = vmatpush1.msra.mxu0 0.0
      %1296 = vmatprep.subr.mxu0 0.0
      %1297 = vmatpush1.msra.mxu0 0.0
      %1298 = vmatprep.subr.mxu0 0.0
      %1299 = vmatpush1.msra.mxu0 0.0
      %1300 = vmatprep.subr.mxu0 0.0
      %1301 = vmatpush1.msra.mxu0 0.0
      %1302 = vmatprep.subr.mxu0 0.0
      %1303 = vmatpush1.msra.mxu0 %v263
      %1304 = vmatprep.subr.mxu0 0.0
      %1305 = vmatpush1.msra.mxu0 %v242
      %1306 = vmatprep.subr.mxu0 0.0
      %1307 = vmatpush1.msra.mxu0 %v221
      %1308 = vmatprep.subr.mxu0 0.0
      %1309 = vmatpush1.msra.mxu0 %v200
      %1310 = vmatprep.subr.mxu0 0.0
      %1311 = vmatpush2.msra.mxu0 0.0
      %1312 = vmatprep.subr.mxu0 0.0
      %1313 = vmatpush2.msra.mxu0 0.0
      %1314 = vmatprep.subr.mxu0 0.0
      %1315 = vmatpush2.msra.mxu0 0.0
      %1316 = vmatprep.subr.mxu0 0.0
      %1317 = vmatpush2.msra.mxu0 0.0
      %1318 = vmatprep.subr.mxu0 0.0
      %1319 = vmatpush2.msra.mxu0 0.0
      %1320 = vmatprep.subr.mxu0 0.0
      %1321 = vmatpush2.msra.mxu0 0.0
      %1322 = vmatprep.subr.mxu0 0.0
      %1323 = vmatpush2.msra.mxu0 0.0
      %1324 = vmatprep.subr.mxu0 0.0
      %1325 = vmatpush2.msra.mxu0 0.0
      %1326 = vmatprep.subr.mxu0 0.0
      %1327 = vmatpush2.msra.mxu0 0.0
      %1328 = vmatprep.subr.mxu0 0.0
      %1329 = vmatpush2.msra.mxu0 0.0
      %1330 = vmatprep.subr.mxu0 0.0
      %1331 = vmatpush2.msra.mxu0 0.0
      %1332 = vmatprep.subr.mxu0 0.0
      %1333 = vmatpush2.msra.mxu0 0.0
      %1334 = vmatprep.subr.mxu0 0.0
      %1335 = vmatpush2.msra.mxu0 0.0
      %1336 = vmatprep.subr.mxu0 0.0
      %1337 = vmatpush2.msra.mxu0 0.0
      %1338 = vmatprep.subr.mxu0 0.0
      %1339 = vmatpush2.msra.mxu0 0.0
      %1340 = vmatprep.subr.mxu0 0.0
      %1341 = vmatpush2.msra.mxu0 0.0
      %1342 = vmatprep.mubr.f32.mxu0 0.0
      %1343 = vmatmul.mubr.f32.gmra.mxu0 %v377
      %v1344 = vpop.f32.mrf.mxu0
      %v1345 = vadd.f32 %v353, %v1344
      %v1346 = vpop.f32.mrf.mxu0
      %1347 = vmatprep.mubr.f32.mxu0 0.0
      %1348 = vmatmul.mubr.f32.gmra.mxu0 %v380
      %v1349 = vpop.f32.mrf.mxu0
      %v1350 = vadd.f32 %v353, %v1349
      %v1351 = vpop.f32.mrf.mxu0
      %1352 = vmatprep.mubr.f32.mxu0 0.0
      %1353 = vmatmul.mubr.f32.gmra.mxu0 %v383
      %v1354 = vpop.f32.mrf.mxu0
      %v1355 = vadd.f32 %v353, %v1354
      %v1356 = vpop.f32.mrf.mxu0
      %1357 = vmatprep.mubr.f32.mxu0 0.0
      %1358 = vmatmul.mubr.f32.gmra.mxu0 %v386
      %v1359 = vpop.f32.mrf.mxu0
      %v1360 = vadd.f32 %v353, %v1359
      %v1361 = vpop.f32.mrf.mxu0
      %1362 = vdwg.mxu0
      %v1363 = vtanh.pop %v455
      %v1364 = vtanh.pop %v457
      %v1365 = vtanh.pop %v544
      %v1366 = vtanh.pop %v546
      %v1367 = vtanh.pop %v633
      %v1368 = vtanh.pop %v635
      %v1369 = vtanh.pop %v722
      %v1370 = vtanh.pop %v724
      %v1371 = vtanh.pop %v811
      %v1372 = vtanh.pop %v813
      %v1373 = vtanh.pop %v900
      %v1374 = vtanh.pop %v902
      %v1375 = vtanh.pop %v989
      %v1376 = vtanh.pop %v991
      %v1377 = vtanh.pop %v1078
      %v1378 = vtanh.pop %v1080
      %v1379 = vtanh.pop %v1167
      %v1380 = vtanh.pop %v1169
      %v1381 = vtanh.pop %v1256
      %v1382 = vtanh.pop %v1258
      %v1383 = vtanh.pop %v1345
      %v1384 = vtanh.pop %v461
      %v1385 = vtanh.pop %v463
      %v1386 = vtanh.pop %v550
      %v1387 = vtanh.pop %v552
      %v1388 = vtanh.pop %v639
      %v1389 = vtanh.pop %v641
      %v1390 = vtanh.pop %v728
      %v1391 = vtanh.pop %v730
      %v1392 = vtanh.pop %v817
      %v1393 = vtanh.pop %v819
      %v1394 = vtanh.pop %v906
      %v1395 = vtanh.pop %v908
      %v1396 = vtanh.pop %v995
      %v1397 = vtanh.pop %v997
      %v1398 = vtanh.pop %v1084
      %v1399 = vtanh.pop %v1086
      %v1400 = vtanh.pop %v1173
      %v1401 = vtanh.pop %v1175
      %v1402 = vtanh.pop %v1262
      %v1403 = vtanh.pop %v1264
      %v1404 = vtanh.pop %v1350
      %v1405 = vtanh.pop %v467
      %v1406 = vtanh.pop %v469
      %v1407 = vtanh.pop %v556
      %v1408 = vtanh.pop %v558
      %v1409 = vtanh.pop %v645
      %v1410 = vtanh.pop %v647
      %v1411 = vtanh.pop %v734
      %v1412 = vtanh.pop %v736
      %v1413 = vtanh.pop %v823
      %v1414 = vtanh.pop %v825
      %v1415 = vtanh.pop %v912
      %v1416 = vtanh.pop %v914
      %v1417 = vtanh.pop %v1001
      %v1418 = vtanh.pop %v1003
      %v1419 = vtanh.pop %v1090
      %v1420 = vtanh.pop %v1092
      %v1421 = vtanh.pop %v1179
      %v1422 = vtanh.pop %v1181
      %v1423 = vtanh.pop %v1268
      %v1424 = vtanh.pop %v1270
      %v1425 = vtanh.pop %v1355
      %v1426 = vtanh.pop %v473
      %v1427 = vtanh.pop %v475
      %v1428 = vtanh.pop %v562
      %v1429 = vtanh.pop %v564
      %v1430 = vtanh.pop %v651
      %v1431 = vtanh.pop %v653
      %v1432 = vtanh.pop %v740
      %v1433 = vtanh.pop %v742
      %v1434 = vtanh.pop %v829
      %v1435 = vtanh.pop %v831
      %v1436 = vtanh.pop %v918
      %v1437 = vtanh.pop %v920
      %v1438 = vtanh.pop %v1007
      %v1439 = vtanh.pop %v1009
      %v1440 = vtanh.pop %v1096
      %v1441 = vtanh.pop %v1098
      %v1442 = vtanh.pop %v1185
      %v1443 = vtanh.pop %v1187
      %v1444 = vtanh.pop %v1274
      %v1445 = vtanh.pop %v1276
      %v1446 = vtanh.pop %v1360
      %1447 = vst [vmem:[%s174] sm:$0xff] %v1363
      %1448 = vst [vmem:[%s174 + $0x8] sm:$0xff] %v1364
      %1449 = vst [vmem:[%s174 + $0x10] sm:$0xff] %v1365
      %1450 = vst [vmem:[%s174 + $0x18] sm:$0xff] %v1366
      %1451 = vst [vmem:[%s174 + $0x20] sm:$0xff] %v1367
      %1452 = vst [vmem:[%s174 + $0x28] sm:$0xff] %v1368
      %1453 = vst [vmem:[%s174 + $0x30] sm:$0xff] %v1369
      %1454 = vst [vmem:[%s174 + $0x38] sm:$0xff] %v1370
      %1455 = vst [vmem:[%s174 + $0x40] sm:$0xff] %v1371
      %1456 = vst [vmem:[%s174 + $0x48] sm:$0xff] %v1372
      %1457 = vst [vmem:[%s174 + $0x50] sm:$0xff] %v1373
      %1458 = vst [vmem:[%s174 + $0x58] sm:$0xff] %v1374
      %1459 = vst [vmem:[%s174 + $0x60] sm:$0xff] %v1375
      %1460 = vst [vmem:[%s174 + $0x68] sm:$0xff] %v1376
      %1461 = vst [vmem:[%s174 + $0x70] sm:$0xff] %v1377
      %1462 = vst [vmem:[%s174 + $0x78] sm:$0xff] %v1378
      %1463 = vst [vmem:[%s174 + $0x80] sm:$0xff] %v1379
      %1464 = vst [vmem:[%s174 + $0x88] sm:$0xff] %v1380
      %1465 = vst [vmem:[%s174 + $0x90] sm:$0xff] %v1381
      %1466 = vst [vmem:[%s174 + $0x98] sm:$0xff] %v1382
      %1467 = vst.msk [vmem:[%s174 + $0xa0] sm:$0xff] %vm375, %v1383
      %1468 = vst [vmem:[%s174 + $0xa8] sm:$0xff] %v1384
      %1469 = vst [vmem:[%s174 + $0xb0] sm:$0xff] %v1385
      %1470 = vst [vmem:[%s174 + $0xb8] sm:$0xff] %v1386
      %1471 = vst [vmem:[%s174 + $0xc0] sm:$0xff] %v1387
      %1472 = vst [vmem:[%s174 + $0xc8] sm:$0xff] %v1388
      %1473 = vst [vmem:[%s174 + $0xd0] sm:$0xff] %v1389
      %1474 = vst [vmem:[%s174 + $0xd8] sm:$0xff] %v1390
      %1475 = vst [vmem:[%s174 + $0xe0] sm:$0xff] %v1391
      %1476 = vst [vmem:[%s174 + $0xe8] sm:$0xff] %v1392
      %1477 = vst [vmem:[%s174 + $0xf0] sm:$0xff] %v1393
      %1478 = vst [vmem:[%s174 + $0xf8] sm:$0xff] %v1394
      %1479 = vst [vmem:[%s174 + $0x100] sm:$0xff] %v1395
      %1480 = vst [vmem:[%s174 + $0x108] sm:$0xff] %v1396
      %1481 = vst [vmem:[%s174 + $0x110] sm:$0xff] %v1397
      %1482 = vst [vmem:[%s174 + $0x118] sm:$0xff] %v1398
      %1483 = vst [vmem:[%s174 + $0x120] sm:$0xff] %v1399
      %1484 = vst [vmem:[%s174 + $0x128] sm:$0xff] %v1400
      %1485 = vst [vmem:[%s174 + $0x130] sm:$0xff] %v1401
      %1486 = vst [vmem:[%s174 + $0x138] sm:$0xff] %v1402
      %1487 = vst [vmem:[%s174 + $0x140] sm:$0xff] %v1403
      %1488 = vst.msk [vmem:[%s174 + $0x148] sm:$0xff] %vm375, %v1404
      %1489 = vst [vmem:[%s174 + $0x150] sm:$0xff] %v1405
      %1490 = vst [vmem:[%s174 + $0x158] sm:$0xff] %v1406
      %1491 = vst [vmem:[%s174 + $0x160] sm:$0xff] %v1407
      %1492 = vst [vmem:[%s174 + $0x168] sm:$0xff] %v1408
      %1493 = vst [vmem:[%s174 + $0x170] sm:$0xff] %v1409
      %1494 = vst [vmem:[%s174 + $0x178] sm:$0xff] %v1410
      %1495 = vst [vmem:[%s174 + $0x180] sm:$0xff] %v1411
      %1496 = vst [vmem:[%s174 + $0x188] sm:$0xff] %v1412
      %1497 = vst [vmem:[%s174 + $0x190] sm:$0xff] %v1413
      %1498 = vst [vmem:[%s174 + $0x198] sm:$0xff] %v1414
      %1499 = vst [vmem:[%s174 + $0x1a0] sm:$0xff] %v1415
      %1500 = vst [vmem:[%s174 + $0x1a8] sm:$0xff] %v1416
      %1501 = vst [vmem:[%s174 + $0x1b0] sm:$0xff] %v1417
      %1502 = vst [vmem:[%s174 + $0x1b8] sm:$0xff] %v1418
      %1503 = vst [vmem:[%s174 + $0x1c0] sm:$0xff] %v1419
      %1504 = vst [vmem:[%s174 + $0x1c8] sm:$0xff] %v1420
      %1505 = vst [vmem:[%s174 + $0x1d0] sm:$0xff] %v1421
      %1506 = vst [vmem:[%s174 + $0x1d8] sm:$0xff] %v1422
      %1507 = vst [vmem:[%s174 + $0x1e0] sm:$0xff] %v1423
      %1508 = vst [vmem:[%s174 + $0x1e8] sm:$0xff] %v1424
      %1509 = vst.msk [vmem:[%s174 + $0x1f0] sm:$0xff] %vm375, %v1425
      %1510 = vst [vmem:[%s174 + $0x1f8] sm:$0xff] %v1426
      %1511 = vst [vmem:[%s174 + $0x200] sm:$0xff] %v1427
      %1512 = vst [vmem:[%s174 + $0x208] sm:$0xff] %v1428
      %1513 = vst [vmem:[%s174 + $0x210] sm:$0xff] %v1429
      %1514 = vst [vmem:[%s174 + $0x218] sm:$0xff] %v1430
      %1515 = vst [vmem:[%s174 + $0x220] sm:$0xff] %v1431
      %1516 = vst [vmem:[%s174 + $0x228] sm:$0xff] %v1432
      %1517 = vst [vmem:[%s174 + $0x230] sm:$0xff] %v1433
      %1518 = vst [vmem:[%s174 + $0x238] sm:$0xff] %v1434
      %1519 = vst [vmem:[%s174 + $0x240] sm:$0xff] %v1435
      %1520 = vst [vmem:[%s174 + $0x248] sm:$0xff] %v1436
      %1521 = vst [vmem:[%s174 + $0x250] sm:$0xff] %v1437
      %1522 = vst [vmem:[%s174 + $0x258] sm:$0xff] %v1438
      %1523 = vst [vmem:[%s174 + $0x260] sm:$0xff] %v1439
      %1524 = vst [vmem:[%s174 + $0x268] sm:$0xff] %v1440
      %1525 = vst [vmem:[%s174 + $0x270] sm:$0xff] %v1441
      %1526 = vst [vmem:[%s174 + $0x278] sm:$0xff] %v1442
      %1527 = vst [vmem:[%s174 + $0x280] sm:$0xff] %v1443
      %1528 = vst [vmem:[%s174 + $0x288] sm:$0xff] %v1444
      %1529 = vst [vmem:[%s174 + $0x290] sm:$0xff] %v1445
      %1530 = vst.msk [vmem:[%s174 + $0x298] sm:$0xff] %vm375, %v1446
      %s1531 = smul.u32 4, %s14
      %p1532 = scmp.lt.s32.totalorder %s1531, 7
      %s1533 = scalar_select %p1532, %s1531, 7
      %s1534 = smul.addr %s1533, 21
      %s1535 = smul.addr %s1534, 8
      %s1536 = scalar_lea.vmem %s3, %s1535
      // Predicated region
      $region33: #{conv_transpose_tanh.1} parent=31 // pred_check
        %p1537 = pneg %p100
      $region34: #{conv_transpose_tanh.1} parent=31 // pred_check_branch
        %1539 = sbr.rel (%p1537) target = $region36
      $region35: #{conv_transpose_tanh.1} parent=31 // pred_region
        %s1540 = smul.u32 4, %s14
      $region36: #{conv_transpose_tanh.1} parent=31 // pred_fallthru
        _
    $region32: #{conv_transpose_tanh.1} parent=5 // pred_fallthru
      _
    %p1541 = scmp.le.s32.totalorder 2, %s9
    // Predicated region
    $region37: #{conv_transpose_tanh.1} parent=5 // pred_check
      %p1542 = pneg %p1541
    $region38: #{conv_transpose_tanh.1} parent=5 // pred_check_branch
      %1544 = sbr.rel (%p1542) target = $region40
    $region39: #{conv_transpose_tanh.1} parent=5 // pred_region
      %s1545 = ssub.s32 %s9, 2
      // Predicated region
      $region41: #{conv_transpose_tanh.1} parent=39 // pred_check
        %p1546 = pneg %p106
      $region42: #{conv_transpose_tanh.1} parent=39 // pred_check_branch
        %1548 = sbr.rel (%p1546) target = $region44
      $region43: #{conv_transpose_tanh.1} parent=39 // pred_region
        %s1549 = smul.u32 4, %s15
        %p1550 = scmp.lt.s32.totalorder %s1549, 7
        %s1551 = scalar_select %p1550, %s1549, 7
        %s1552 = smul.addr %s1551, 21
        %s1553 = smul.addr %s1552, 8
        %s1554 = scalar_lea.vmem %s3, %s1553
      $region44: #{conv_transpose_tanh.1} parent=39 // pred_fallthru
        _
    $region40: #{conv_transpose_tanh.1} parent=5 // pred_fallthru
      _
  $region6: #{conv_transpose_tanh.1} parent=0 // loop_footer
    %s13 = sadd.s32 1, %s9
  $region7: #{conv_transpose_tanh.1} parent=0 // loop_footer_branch
    %8 = sbr.rel target = $region3
  $region8: #{conv_transpose_tanh.1} parent=0 // loop_exit
    _

</llo_original>
